<compile_context>
chip_gen: v7x
topology: tpu7x:2x2x1
jax: 0.10.0
libtpu: 0.0.40
codegen_flags: <defaults>
</compile_context>

<pallas_src>
import jax
import jax.numpy as jnp
from jax import lax
from jax.experimental import pallas as pl
from jax.experimental.pallas import tpu as pltpu


# ----------------------------------------------------------------------------
# Fused Pallas kernel: projections + 2x2 pool + attention + W/BN + residual
# ----------------------------------------------------------------------------
def nonlocal_kernel(x_ref, xw_ref, wt_ref, bt_ref, wpg_ref, bpg_ref,
                    ww_ref, bw_ref, out_ref):
    """
    x_ref:   (1, C, N)      channels-first, spatially flattened (lane-dense N)
    xw_ref:  (1, 4, C, Np)  window-offset-major view: xw[0, q, :, m] is the
                            pixel at 2x2-window m, offset q
    wt_ref:  (Ci, C)   bt_ref:  (Ci, 1)       theta 1x1 conv
    wpg_ref: (2Ci, C)  bpg_ref: (2Ci, 1)      phi & g 1x1 convs (concatenated)
    ww_ref:  (C, Ci)   bw_ref:  (C, 1)        W 1x1 conv with BN folded in
    out_ref: (1, C, N)
    """
    ci = wt_ref.shape[0]
    x = x_ref[0]                                                     # (C, N)

    # theta projection — lane-dense over N.
    theta = (jnp.dot(wt_ref[...], x, preferred_element_type=jnp.float32)
             + bt_ref[...])                                          # (Ci, N)

    # phi/g projections (one fused weight) with the 2x2 max-pool expressed as
    # an elementwise max over the 4 window offsets (conv-then-pool).
    pg = jnp.dot(wpg_ref[...], xw_ref[0, 0],
                 preferred_element_type=jnp.float32)                 # (2Ci, Np)
    for q in range(1, 4):
        pg = jnp.maximum(
            pg, jnp.dot(wpg_ref[...], xw_ref[0, q],
                        preferred_element_type=jnp.float32))
    pg = pg + bpg_ref[...]
    phi = pg[:ci]                                                    # (Ci, Np)
    g = pg[ci:]                                                      # (Ci, Np)

    # attention scores f[n, m] = sum_ci theta[ci, n] * phi[ci, m]
    f = lax.dot_general(theta, phi, (((0,), (0,)), ((), ())),
                        preferred_element_type=jnp.float32)          # (N, Np)

    # softmax over m (lane axis); reciprocal goes to the EUP slot.
    fmax = jnp.max(f, axis=-1, keepdims=True)
    e = jnp.exp(f - fmax)
    denom = jnp.sum(e, axis=-1, keepdims=True)
    p = e * pl.reciprocal(denom, approx=True)                        # (N, Np)

    # y[ci, n] = sum_m p[n, m] * g[ci, m]
    y = lax.dot_general(g, p, (((1,), (1,)), ((), ())),
                        preferred_element_type=jnp.float32)          # (Ci, N)

    # W projection (BN folded) + residual.
    wy = (jnp.dot(ww_ref[...], y, preferred_element_type=jnp.float32)
          + bw_ref[...])                                             # (C, N)
    out_ref[0] = wy + x


# ----------------------------------------------------------------------------
# Layout glue (pure reshapes / concats, done in XLA)
# ----------------------------------------------------------------------------
def joint(x, v=4):
    """(b*v, c, h, w) -> (b, c, 2h, 2w) 2x2 mosaic: views 0|1 on top, 2|3 below."""
    bv, c, h, w = x.shape
    b = bv // v
    xr = x.reshape(b, v, c, h, w)
    top = jnp.concatenate([xr[:, 0], xr[:, 1]], axis=-1)             # (b, c, h, 2w)
    bot = jnp.concatenate([xr[:, 2], xr[:, 3]], axis=-1)             # (b, c, h, 2w)
    return jnp.concatenate([top, bot], axis=-2)                      # (b, c, 2h, 2w)


# ----------------------------------------------------------------------------
# Forward
# ----------------------------------------------------------------------------
def non_local_block(xj, raw):
    b, c, H, W = xj.shape
    ci = raw["w_theta"].shape[0]
    N = H * W
    Hp, Wp = H // 2, W // 2
    Np = Hp * Wp

    # Parameter prep (cheap XLA ops). Eval-mode BN folded into the W projection.
    eps = 1e-5
    bn_scale = raw["bn_gamma"] / jnp.sqrt(raw["bn_var"] + eps)
    bn_shift = raw["bn_beta"] - raw["bn_mean"] * bn_scale
    w_w_f = raw["w_w"] * bn_scale[:, None]                           # (C, Ci)
    b_w_f = (raw["b_w"] * bn_scale + bn_shift)[:, None]              # (C, 1)
    w_pg = jnp.concatenate([raw["w_phi"], raw["w_g"]], axis=0)       # (2Ci, C)
    b_pg = jnp.concatenate([raw["b_phi"], raw["b_g"]], axis=0)[:, None]
    b_t = raw["b_theta"][:, None]                                    # (Ci, 1)

    # Channels-first flatten (lane-dense N); matches .view(b, c, -1).
    x_flat = xj.reshape(b, c, N)
    # Window-offset-major view for the conv-then-pool phi/g path:
    #   x_win[b, q, :, m] = xj[b, :, 2*(m//Wp) + q//2, 2*(m%Wp) + q%2]
    x_win = (xj.reshape(b, c, Hp, 2, Wp, 2)
               .transpose(0, 3, 5, 1, 2, 4)
               .reshape(b, 4, c, Np))

    out_flat = pl.pallas_call(
        nonlocal_kernel,
        out_shape=jax.ShapeDtypeStruct((b, c, N), jnp.float32),
        grid_spec=pltpu.PrefetchScalarGridSpec(
            num_scalar_prefetch=0,
            grid=(b,),
            in_specs=[
                pl.BlockSpec((1, c, N), lambda i: (i, 0, 0)),
                pl.BlockSpec((1, 4, c, Np), lambda i: (i, 0, 0, 0)),
                pl.BlockSpec((ci, c), lambda i: (0, 0)),
                pl.BlockSpec((ci, 1), lambda i: (0, 0)),
                pl.BlockSpec((2 * ci, c), lambda i: (0, 0)),
                pl.BlockSpec((2 * ci, 1), lambda i: (0, 0)),
                pl.BlockSpec((c, ci), lambda i: (0, 0)),
                pl.BlockSpec((c, 1), lambda i: (0, 0)),
            ],
            out_specs=pl.BlockSpec((1, c, N), lambda i: (i, 0, 0)),
        ),
        compiler_params=pltpu.CompilerParams(
            dimension_semantics=("parallel",)),
    )(x_flat, x_win, raw["w_theta"], b_t, w_pg, b_pg, w_w_f, b_w_f)

    return out_flat.reshape(b, c, H, W)


@jax.jit
def joint_layer_forward(x, raw):
    # NOTE: conv1/conv2 from the module's __init__ are never used in forward().
    return non_local_block(joint(x, v=4), raw)


# ----------------------------------------------------------------------------
# Pure-JAX reference (unfused, unfolded BN) for the correctness check
# ----------------------------------------------------------------------------
def reference_forward(x, raw):
    xj = joint(x, v=4)
    b, c, H, W = xj.shape
    N = H * W
    xf = xj.reshape(b, c, N)
    hi = lax.Precision.HIGHEST

    def proj(wm, bias, a):
        return jnp.einsum("oc,bcn->bon", wm, a, precision=hi) + bias[None, :, None]

    theta = proj(raw["w_theta"], raw["b_theta"], xf)
    phi = proj(raw["w_phi"], raw["b_phi"], xf)
    g = proj(raw["w_g"], raw["b_g"], xf)

    def pool(a):
        a = a.reshape(b, -1, H // 2, 2, W // 2, 2).max(axis=(3, 5))
        return a.reshape(b, a.shape[1], (H // 2) * (W // 2))

    phi, g = pool(phi), pool(g)
    f = jnp.einsum("bcn,bcm->bnm", theta, phi, precision=hi)
    p = jax.nn.softmax(f, axis=-1)
    y = jnp.einsum("bnm,bcm->bcn", p, g, precision=hi)
    wy = jnp.einsum("oc,bcn->bon", raw["w_w"], y, precision=hi) + raw["b_w"][None, :, None]

    eps = 1e-5
    bn_scale = raw["bn_gamma"] / jnp.sqrt(raw["bn_var"] + eps)
    bn_shift = raw["bn_beta"] - raw["bn_mean"] * bn_scale
    wy = wy * bn_scale[None, :, None] + bn_shift[None, :, None]
    return (wy + xf).reshape(b, c, H, W)


# ----------------------------------------------------------------------------
# Main
# ----------------------------------------------------------------------------
if __name__ == "__main__":
    # input x: (b*4, C, h, w); after joint -> (b, C, 2h, 2w); N = (2h)*(2w) = 256
    b, v, C, h, w = 2, 4, 16, 8, 8
    Ci = C // 2                                                      # inter_channels

    key = jax.random.PRNGKey(0)
    keys = jax.random.split(key, 13)

    x = jax.random.normal(keys[0], (b * v, C, h, w), jnp.float32)

    def winit(k, shape, scale=0.1):
        return scale * jax.random.normal(k, shape, jnp.float32)

    raw = {
        # 1x1 conv weights in (out, in) orientation; biases (out,)
        "w_theta": winit(keys[1], (Ci, C)),
        "b_theta": winit(keys[2], (Ci,)),
        "w_phi": winit(keys[3], (Ci, C)),
        "b_phi": winit(keys[4], (Ci,)),
        "w_g": winit(keys[5], (Ci, C)),
        "b_g": winit(keys[6], (Ci,)),
        "w_w": winit(keys[7], (C, Ci)),
        "b_w": winit(keys[8], (C,)),
        # eval-mode BatchNorm parameters (nonzero gamma so the block is nontrivial)
        "bn_gamma": 0.5 + 0.1 * jax.random.normal(keys[9], (C,), jnp.float32),
        "bn_beta": 0.1 * jax.random.normal(keys[10], (C,), jnp.float32),
        "bn_mean": 0.1 * jax.random.normal(keys[11], (C,), jnp.float32),
        "bn_var": 1.0 + 0.1 * jax.random.uniform(keys[12], (C,), jnp.float32),
    }

    out = jax.block_until_ready(joint_layer_forward(x, raw))
    ref = reference_forward(x, raw)

    assert out.shape == (b, C, 2 * h, 2 * w), out.shape
    # tolerance loosened slightly vs 1e-4 because of pl.reciprocal(approx=True)
    assert jnp.allclose(out, ref, atol=1e-3, rtol=1e-3), (
        "mismatch vs reference, max abs err = "
        + str(float(jnp.max(jnp.abs(out - ref)))))

    print("KERNEL_OK")
</pallas_src>

<mosaic_0001>
module attributes {stable_mosaic.version = 11 : i64} {
  func.func @nonlocal_kernel(%arg0: i32, %arg1: memref<1x16x256xf32, #tpu.memory_space<vmem>>, %arg2: memref<1x4x16x64xf32, #tpu.memory_space<vmem>>, %arg3: memref<8x16xf32, #tpu.memory_space<vmem>>, %arg4: memref<8x1xf32, #tpu.memory_space<vmem>>, %arg5: memref<16x16xf32, #tpu.memory_space<vmem>>, %arg6: memref<16x1xf32, #tpu.memory_space<vmem>>, %arg7: memref<16x8xf32, #tpu.memory_space<vmem>>, %arg8: memref<16x1xf32, #tpu.memory_space<vmem>>, %arg9: memref<1x16x256xf32, #tpu.memory_space<vmem>>) attributes {dimension_semantics = [#tpu.dimension_semantics<parallel>], iteration_bounds = array<i64: 2>, scalar_prefetch = 0 : i64, scratch_operands = 0 : i64, tpu.core_type = #tpu.core_type<tc>, window_params = [{transform_indices = @transform_0, window_bounds = array<i64: 1, 16, 256>}, {transform_indices = @transform_1, window_bounds = array<i64: 1, 4, 16, 64>}, {pipeline_mode = #tpu.pipeline_mode<synchronous>, transform_indices = @transform_2, window_bounds = array<i64: 8, 16>}, {pipeline_mode = #tpu.pipeline_mode<synchronous>, transform_indices = @transform_3, window_bounds = array<i64: 8, 1>}, {pipeline_mode = #tpu.pipeline_mode<synchronous>, transform_indices = @transform_4, window_bounds = array<i64: 16, 16>}, {pipeline_mode = #tpu.pipeline_mode<synchronous>, transform_indices = @transform_5, window_bounds = array<i64: 16, 1>}, {pipeline_mode = #tpu.pipeline_mode<synchronous>, transform_indices = @transform_6, window_bounds = array<i64: 16, 8>}, {pipeline_mode = #tpu.pipeline_mode<synchronous>, transform_indices = @transform_7, window_bounds = array<i64: 16, 1>}, {transform_indices = @transform_8, window_bounds = array<i64: 1, 16, 256>}]} {
    %c0 = arith.constant 0 : index
    %c0_0 = arith.constant 0 : index
    %c0_1 = arith.constant 0 : index
    %0 = vector.load %arg1[%c0, %c0_0, %c0_1] : memref<1x16x256xf32, #tpu.memory_space<vmem>>, vector<1x16x256xf32>
    %1 = vector.shape_cast %0 : vector<1x16x256xf32> to vector<16x256xf32>
    %c0_2 = arith.constant 0 : index
    %c0_3 = arith.constant 0 : index
    %2 = vector.load %arg3[%c0_2, %c0_3] : memref<8x16xf32, #tpu.memory_space<vmem>>, vector<8x16xf32>
    %cst = arith.constant dense<0.000000e+00> : vector<8x256xf32>
    %3 = tpu.matmul %2, %1, %cst {dimension_numbers = #tpu.dot_dimension_numbers<[1], [0], [0], [1], [0, 0, 1, 1], [], []>} : vector<8x16xf32>, vector<16x256xf32>, vector<8x256xf32> -> vector<8x256xf32>
    %c0_4 = arith.constant 0 : index
    %c0_5 = arith.constant 0 : index
    %4 = vector.load %arg4[%c0_4, %c0_5] : memref<8x1xf32, #tpu.memory_space<vmem>>, vector<8x1xf32>
    %5 = vector.broadcast %4 : vector<8x1xf32> to vector<8x256xf32>
    %6 = arith.addf %3, %5 : vector<8x256xf32>
    %c0_6 = arith.constant 0 : index
    %c0_7 = arith.constant 0 : index
    %7 = vector.load %arg5[%c0_6, %c0_7] : memref<16x16xf32, #tpu.memory_space<vmem>>, vector<16x16xf32>
    %c0_8 = arith.constant 0 : index
    %c0_9 = arith.constant 0 : index
    %c0_10 = arith.constant 0 : index
    %c0_11 = arith.constant 0 : index
    %8 = vector.load %arg2[%c0_8, %c0_9, %c0_10, %c0_11] : memref<1x4x16x64xf32, #tpu.memory_space<vmem>>, vector<1x1x16x64xf32>
    %9 = vector.shape_cast %8 : vector<1x1x16x64xf32> to vector<16x64xf32>
    %cst_12 = arith.constant dense<0.000000e+00> : vector<16x64xf32>
    %10 = tpu.matmul %7, %9, %cst_12 {dimension_numbers = #tpu.dot_dimension_numbers<[1], [0], [0], [1], [0, 0, 1, 1], [], []>} : vector<16x16xf32>, vector<16x64xf32>, vector<16x64xf32> -> vector<16x64xf32>
    %c0_13 = arith.constant 0 : index
    %c0_14 = arith.constant 0 : index
    %11 = vector.load %arg5[%c0_13, %c0_14] : memref<16x16xf32, #tpu.memory_space<vmem>>, vector<16x16xf32>
    %c0_15 = arith.constant 0 : index
    %c1 = arith.constant 1 : index
    %c0_16 = arith.constant 0 : index
    %c0_17 = arith.constant 0 : index
    %12 = vector.load %arg2[%c0_15, %c1, %c0_16, %c0_17] : memref<1x4x16x64xf32, #tpu.memory_space<vmem>>, vector<1x1x16x64xf32>
    %13 = vector.shape_cast %12 : vector<1x1x16x64xf32> to vector<16x64xf32>
    %cst_18 = arith.constant dense<0.000000e+00> : vector<16x64xf32>
    %14 = tpu.matmul %11, %13, %cst_18 {dimension_numbers = #tpu.dot_dimension_numbers<[1], [0], [0], [1], [0, 0, 1, 1], [], []>} : vector<16x16xf32>, vector<16x64xf32>, vector<16x64xf32> -> vector<16x64xf32>
    %15 = arith.maximumf %10, %14 : vector<16x64xf32>
    %c0_19 = arith.constant 0 : index
    %c0_20 = arith.constant 0 : index
    %16 = vector.load %arg5[%c0_19, %c0_20] : memref<16x16xf32, #tpu.memory_space<vmem>>, vector<16x16xf32>
    %c0_21 = arith.constant 0 : index
    %c2 = arith.constant 2 : index
    %c0_22 = arith.constant 0 : index
    %c0_23 = arith.constant 0 : index
    %17 = vector.load %arg2[%c0_21, %c2, %c0_22, %c0_23] : memref<1x4x16x64xf32, #tpu.memory_space<vmem>>, vector<1x1x16x64xf32>
    %18 = vector.shape_cast %17 : vector<1x1x16x64xf32> to vector<16x64xf32>
    %cst_24 = arith.constant dense<0.000000e+00> : vector<16x64xf32>
    %19 = tpu.matmul %16, %18, %cst_24 {dimension_numbers = #tpu.dot_dimension_numbers<[1], [0], [0], [1], [0, 0, 1, 1], [], []>} : vector<16x16xf32>, vector<16x64xf32>, vector<16x64xf32> -> vector<16x64xf32>
    %20 = arith.maximumf %15, %19 : vector<16x64xf32>
    %c0_25 = arith.constant 0 : index
    %c0_26 = arith.constant 0 : index
    %21 = vector.load %arg5[%c0_25, %c0_26] : memref<16x16xf32, #tpu.memory_space<vmem>>, vector<16x16xf32>
    %c0_27 = arith.constant 0 : index
    %c3 = arith.constant 3 : index
    %c0_28 = arith.constant 0 : index
    %c0_29 = arith.constant 0 : index
    %22 = vector.load %arg2[%c0_27, %c3, %c0_28, %c0_29] : memref<1x4x16x64xf32, #tpu.memory_space<vmem>>, vector<1x1x16x64xf32>
    %23 = vector.shape_cast %22 : vector<1x1x16x64xf32> to vector<16x64xf32>
    %cst_30 = arith.constant dense<0.000000e+00> : vector<16x64xf32>
    %24 = tpu.matmul %21, %23, %cst_30 {dimension_numbers = #tpu.dot_dimension_numbers<[1], [0], [0], [1], [0, 0, 1, 1], [], []>} : vector<16x16xf32>, vector<16x64xf32>, vector<16x64xf32> -> vector<16x64xf32>
    %25 = arith.maximumf %20, %24 : vector<16x64xf32>
    %c0_31 = arith.constant 0 : index
    %c0_32 = arith.constant 0 : index
    %26 = vector.load %arg6[%c0_31, %c0_32] : memref<16x1xf32, #tpu.memory_space<vmem>>, vector<16x1xf32>
    %27 = vector.broadcast %26 : vector<16x1xf32> to vector<16x64xf32>
    %28 = arith.addf %25, %27 : vector<16x64xf32>
    %29 = vector.extract_strided_slice %28 {offsets = [0, 0], sizes = [8, 64], strides = [1, 1]} : vector<16x64xf32> to vector<8x64xf32>
    %30 = vector.extract_strided_slice %28 {offsets = [8, 0], sizes = [8, 64], strides = [1, 1]} : vector<16x64xf32> to vector<8x64xf32>
    %cst_33 = arith.constant dense<0.000000e+00> : vector<256x64xf32>
    %31 = tpu.matmul %6, %29, %cst_33 {dimension_numbers = #tpu.dot_dimension_numbers<[0], [0], [1], [1], [0, 1, 1, 1], [], []>} : vector<8x256xf32>, vector<8x64xf32>, vector<256x64xf32> -> vector<256x64xf32>
    %cst_34 = arith.constant dense<0xFF800000> : vector<256xf32>
    %32 = vector.multi_reduction <maximumf>, %31, %cst_34 [1] : vector<256x64xf32> to vector<256xf32>
    %33 = vector.shape_cast %32 : vector<256xf32> to vector<256x1xf32>
    %34 = vector.broadcast %33 : vector<256x1xf32> to vector<256x64xf32>
    %35 = arith.subf %31, %34 : vector<256x64xf32>
    %36 = math.exp %35 : vector<256x64xf32>
    %cst_35 = arith.constant dense<0.000000e+00> : vector<256xf32>
    %37 = vector.multi_reduction <add>, %36, %cst_35 [1] : vector<256x64xf32> to vector<256xf32>
    %38 = vector.shape_cast %37 : vector<256xf32> to vector<256x1xf32>
    %39 = tpu.reciprocal %38 {approx = true} : vector<256x1xf32> -> vector<256x1xf32>
    %40 = vector.broadcast %39 : vector<256x1xf32> to vector<256x64xf32>
    %41 = arith.mulf %36, %40 : vector<256x64xf32>
    %cst_36 = arith.constant dense<0.000000e+00> : vector<8x256xf32>
    %42 = tpu.matmul %30, %41, %cst_36 {dimension_numbers = #tpu.dot_dimension_numbers<[1], [1], [0], [0], [0, 0, 1, 0], [], []>} : vector<8x64xf32>, vector<256x64xf32>, vector<8x256xf32> -> vector<8x256xf32>
    %c0_37 = arith.constant 0 : index
    %c0_38 = arith.constant 0 : index
    %43 = vector.load %arg7[%c0_37, %c0_38] : memref<16x8xf32, #tpu.memory_space<vmem>>, vector<16x8xf32>
    %cst_39 = arith.constant dense<0.000000e+00> : vector<16x256xf32>
    %44 = tpu.matmul %43, %42, %cst_39 {dimension_numbers = #tpu.dot_dimension_numbers<[1], [0], [0], [1], [0, 0, 1, 1], [], []>} : vector<16x8xf32>, vector<8x256xf32>, vector<16x256xf32> -> vector<16x256xf32>
    %c0_40 = arith.constant 0 : index
    %c0_41 = arith.constant 0 : index
    %45 = vector.load %arg8[%c0_40, %c0_41] : memref<16x1xf32, #tpu.memory_space<vmem>>, vector<16x1xf32>
    %46 = vector.broadcast %45 : vector<16x1xf32> to vector<16x256xf32>
    %47 = arith.addf %44, %46 : vector<16x256xf32>
    %48 = arith.addf %47, %1 : vector<16x256xf32>
    %c0_42 = arith.constant 0 : index
    %c0_43 = arith.constant 0 : index
    %c0_44 = arith.constant 0 : index
    %49 = vector.load %arg9[%c0_42, %c0_43, %c0_44] : memref<1x16x256xf32, #tpu.memory_space<vmem>>, vector<1x16x256xf32>
    %50 = vector.shape_cast %49 : vector<1x16x256xf32> to vector<16x256xf32>
    %51 = vector.shape_cast %48 : vector<16x256xf32> to vector<1x16x256xf32>
    tpu.vector_store %arg9[%c0_42, %c0_43, %c0_44], %51 {strides = array<i32>} : memref<1x16x256xf32, #tpu.memory_space<vmem>>, vector<1x16x256xf32>,
    return
  }
  func.func @transform_0(%arg0: i32) -> (i32, i32, i32) {
    %c0_i32 = arith.constant 0 : i32
    %c0_i32_0 = arith.constant 0 : i32
    %c0_i32_1 = arith.constant 0 : i32
    return %arg0, %c0_i32, %c0_i32_0 : i32, i32, i32
  }
  func.func @transform_1(%arg0: i32) -> (i32, i32, i32, i32) {
    %c0_i32 = arith.constant 0 : i32
    %c0_i32_0 = arith.constant 0 : i32
    %c0_i32_1 = arith.constant 0 : i32
    %c0_i32_2 = arith.constant 0 : i32
    return %arg0, %c0_i32, %c0_i32_0, %c0_i32_1 : i32, i32, i32, i32
  }
  func.func @transform_2(%arg0: i32) -> (i32, i32) {
    %c0_i32 = arith.constant 0 : i32
    %c0_i32_0 = arith.constant 0 : i32
    %c0_i32_1 = arith.constant 0 : i32
    return %c0_i32, %c0_i32_0 : i32, i32
  }
  func.func @transform_3(%arg0: i32) -> (i32, i32) {
    %c0_i32 = arith.constant 0 : i32
    %c0_i32_0 = arith.constant 0 : i32
    %c0_i32_1 = arith.constant 0 : i32
    return %c0_i32, %c0_i32_0 : i32, i32
  }
  func.func @transform_4(%arg0: i32) -> (i32, i32) {
    %c0_i32 = arith.constant 0 : i32
    %c0_i32_0 = arith.constant 0 : i32
    %c0_i32_1 = arith.constant 0 : i32
    return %c0_i32, %c0_i32_0 : i32, i32
  }
  func.func @transform_5(%arg0: i32) -> (i32, i32) {
    %c0_i32 = arith.constant 0 : i32
    %c0_i32_0 = arith.constant 0 : i32
    %c0_i32_1 = arith.constant 0 : i32
    return %c0_i32, %c0_i32_0 : i32, i32
  }
  func.func @transform_6(%arg0: i32) -> (i32, i32) {
    %c0_i32 = arith.constant 0 : i32
    %c0_i32_0 = arith.constant 0 : i32
    %c0_i32_1 = arith.constant 0 : i32
    return %c0_i32, %c0_i32_0 : i32, i32
  }
  func.func @transform_7(%arg0: i32) -> (i32, i32) {
    %c0_i32 = arith.constant 0 : i32
    %c0_i32_0 = arith.constant 0 : i32
    %c0_i32_1 = arith.constant 0 : i32
    return %c0_i32, %c0_i32_0 : i32, i32
  }
  func.func @transform_8(%arg0: i32) -> (i32, i32, i32) {
    %c0_i32 = arith.constant 0 : i32
    %c0_i32_0 = arith.constant 0 : i32
    %c0_i32_1 = arith.constant 0 : i32
    return %arg0, %c0_i32, %c0_i32_0 : i32, i32, i32
  }
}

</mosaic_0001>

<llo_original>
// kernel: joint_layer_forward.1
$region0: #{joint_layer_forward.1}
  #allocation0 [shape = 'u32[]', space=smem, size = 0x4, offset = 0x4, fixed_abs, tag = 'smem constant byte address 0x4 - core index']
  #allocation1 [shape = 'u32[144,128]{1,0:T(1,128)}', space=vmem, size = 0x12000, scoped, tag = 'internal scratch']
  %s0 = inlined_call_operand.vmem [shape: f32[2,16,256], index: 0, kind: input, shape index: {}]
  %s1 = inlined_call_operand.vmem [shape: f32[2,4,16,64], index: 1, kind: input, shape index: {}]
  %s2 = inlined_call_operand.vmem [shape: f32[8,16], index: 2, kind: input, shape index: {}]
  %s3 = inlined_call_operand.vmem [shape: f32[8,1], index: 3, kind: input, shape index: {}]
  %s4 = inlined_call_operand.vmem [shape: f32[16,16], index: 4, kind: input, shape index: {}]
  %s5 = inlined_call_operand.vmem [shape: f32[16,1], index: 5, kind: input, shape index: {}]
  %s6 = inlined_call_operand.vmem [shape: f32[16,8], index: 6, kind: input, shape index: {}]
  %s7 = inlined_call_operand.vmem [shape: f32[16,1], index: 7, kind: input, shape index: {}]
  %s8 = inlined_call_operand.vmem [shape: f32[2,16,256], index: 8, kind: output, shape index: {}]
  %s9 = sld [smem:[#allocation0]]
  $region65: #{joint_layer_forward.1} parent=0
    _
  %s11 = ssub.s32 1, %s9
  %s12 = scalar_select 0, %s11, %s9
  loop: start=0, step=1, limit=4
  $region2: #{joint_layer_forward.1} parent=0 // loop_pre_header
    _
  $region3: #{joint_layer_forward.1} parent=0 // loop_header
    %s14 = sphi 0, %s18
    %p15 = scmp.ge.s32.totalorder %s14, 4
    %s24 = sphi 0, %s26
    %s27 = sphi 0, %s24
    %s28 = sphi 0, %s27
    %s44 = sphi 0, %s28
    %s50 = sphi 0, %s52
    %s53 = sphi 0, %s50
    %s54 = sphi 0, %s53
    %s70 = sphi 0, %s54
    %s74 = sphi 0, %s74
    %s76 = sphi 0, %s74
    %s77 = sphi 0, %s76
    %s91 = sphi 0, %s77
    %s95 = sphi 0, %s95
    %s97 = sphi 0, %s95
    %s98 = sphi 0, %s97
    %s112 = sphi 0, %s98
    %s116 = sphi 0, %s116
    %s118 = sphi 0, %s116
    %s119 = sphi 0, %s118
    %s133 = sphi 0, %s119
    %s137 = sphi 0, %s137
    %s139 = sphi 0, %s137
    %s140 = sphi 0, %s139
    %s154 = sphi 0, %s140
    %s158 = sphi 0, %s158
    %s160 = sphi 0, %s158
    %s161 = sphi 0, %s160
    %s175 = sphi 0, %s161
    %s179 = sphi 0, %s179
    %s181 = sphi 0, %s179
    %s182 = sphi 0, %s181
    %s196 = sphi 0, %s182
    %s202 = sphi 0, %s204
    %s205 = sphi 0, %s202
    %s206 = sphi 0, %s205
    %s222 = sphi 0, %s206
  $region4: #{joint_layer_forward.1} parent=0 // loop_header_branch
    %17 = sbr.rel (%p15) target = $region8
  $region5: #{joint_layer_forward.1} parent=0 // loop_body
    %s19 = ssub.s32 %s14, 1
    %s20 = ssub.s32 %s14, 2
    %s21 = sadd.s32 %s14, 1
    %s22 = ssub.s32 %s14, %s21
    %p23 = scmp.eq.s32.totalorder %s22, 0
    %s25 = sadd.s32 %s24, 1
    %s26 = scalar_select %p23, %s24, %s25
    %p29 = pneg %p23
    %p30 = scmp.eq.s32.totalorder %s14, 1
    %p31 = por %p29, %p30
    %p32 = scmp.ne.s32.totalorder %s24, %s27
    %p33 = scmp.eq.s32.totalorder %s14, 0
    %p34 = por %p32, %p33
    %p35 = scmp.ne.s32.totalorder %s24, %s27
    %p36 = scmp.eq.s32.totalorder %s19, 1
    %p37 = por %p35, %p36
    %p38 = scmp.ne.s32.totalorder %s27, %s28
    %p39 = scmp.eq.s32.totalorder %s19, 0
    %p40 = por %p38, %p39
    %p41 = scmp.ne.s32.totalorder %s27, %s28
    %p42 = scmp.eq.s32.totalorder %s20, 1
    %p43 = por %p41, %p42
    %p45 = scmp.ne.s32.totalorder %s28, %s44
    %p46 = scmp.eq.s32.totalorder %s20, 0
    %p47 = por %p45, %p46
    %s48 = ssub.s32 %s14, %s21
    %p49 = scmp.eq.s32.totalorder %s48, 0
    %s51 = sadd.s32 %s50, 1
    %s52 = scalar_select %p49, %s50, %s51
    %p55 = pneg %p49
    %p56 = scmp.eq.s32.totalorder %s14, 1
    %p57 = por %p55, %p56
    %p58 = scmp.ne.s32.totalorder %s50, %s53
    %p59 = scmp.eq.s32.totalorder %s14, 0
    %p60 = por %p58, %p59
    %p61 = scmp.ne.s32.totalorder %s50, %s53
    %p62 = scmp.eq.s32.totalorder %s19, 1
    %p63 = por %p61, %p62
    %p64 = scmp.ne.s32.totalorder %s53, %s54
    %p65 = scmp.eq.s32.totalorder %s19, 0
    %p66 = por %p64, %p65
    %p67 = scmp.ne.s32.totalorder %s53, %s54
    %p68 = scmp.eq.s32.totalorder %s20, 1
    %p69 = por %p67, %p68
    %p71 = scmp.ne.s32.totalorder %s54, %s70
    %p72 = scmp.eq.s32.totalorder %s20, 0
    %p73 = por %p71, %p72
    %s75 = sadd.s32 %s74, 1
    %p78 = scmp.eq.s32.totalorder %s14, 1
    %p79 = scmp.ne.s32.totalorder %s74, %s76
    %p80 = scmp.eq.s32.totalorder %s14, 0
    %p81 = por %p79, %p80
    %p82 = scmp.ne.s32.totalorder %s74, %s76
    %p83 = scmp.eq.s32.totalorder %s19, 1
    %p84 = por %p82, %p83
    %p85 = scmp.ne.s32.totalorder %s76, %s77
    %p86 = scmp.eq.s32.totalorder %s19, 0
    %p87 = por %p85, %p86
    %p88 = scmp.ne.s32.totalorder %s76, %s77
    %p89 = scmp.eq.s32.totalorder %s20, 1
    %p90 = por %p88, %p89
    %p92 = scmp.ne.s32.totalorder %s77, %s91
    %p93 = scmp.eq.s32.totalorder %s20, 0
    %p94 = por %p92, %p93
    %s96 = sadd.s32 %s95, 1
    %p99 = scmp.eq.s32.totalorder %s14, 1
    %p100 = scmp.ne.s32.totalorder %s95, %s97
    %p101 = scmp.eq.s32.totalorder %s14, 0
    %p102 = por %p100, %p101
    %p103 = scmp.ne.s32.totalorder %s95, %s97
    %p104 = scmp.eq.s32.totalorder %s19, 1
    %p105 = por %p103, %p104
    %p106 = scmp.ne.s32.totalorder %s97, %s98
    %p107 = scmp.eq.s32.totalorder %s19, 0
    %p108 = por %p106, %p107
    %p109 = scmp.ne.s32.totalorder %s97, %s98
    %p110 = scmp.eq.s32.totalorder %s20, 1
    %p111 = por %p109, %p110
    %p113 = scmp.ne.s32.totalorder %s98, %s112
    %p114 = scmp.eq.s32.totalorder %s20, 0
    %p115 = por %p113, %p114
    %s117 = sadd.s32 %s116, 1
    %p120 = scmp.eq.s32.totalorder %s14, 1
    %p121 = scmp.ne.s32.totalorder %s116, %s118
    %p122 = scmp.eq.s32.totalorder %s14, 0
    %p123 = por %p121, %p122
    %p124 = scmp.ne.s32.totalorder %s116, %s118
    %p125 = scmp.eq.s32.totalorder %s19, 1
    %p126 = por %p124, %p125
    %p127 = scmp.ne.s32.totalorder %s118, %s119
    %p128 = scmp.eq.s32.totalorder %s19, 0
    %p129 = por %p127, %p128
    %p130 = scmp.ne.s32.totalorder %s118, %s119
    %p131 = scmp.eq.s32.totalorder %s20, 1
    %p132 = por %p130, %p131
    %p134 = scmp.ne.s32.totalorder %s119, %s133
    %p135 = scmp.eq.s32.totalorder %s20, 0
    %p136 = por %p134, %p135
    %s138 = sadd.s32 %s137, 1
    %p141 = scmp.eq.s32.totalorder %s14, 1
    %p142 = scmp.ne.s32.totalorder %s137, %s139
    %p143 = scmp.eq.s32.totalorder %s14, 0
    %p144 = por %p142, %p143
    %p145 = scmp.ne.s32.totalorder %s137, %s139
    %p146 = scmp.eq.s32.totalorder %s19, 1
    %p147 = por %p145, %p146
    %p148 = scmp.ne.s32.totalorder %s139, %s140
    %p149 = scmp.eq.s32.totalorder %s19, 0
    %p150 = por %p148, %p149
    %p151 = scmp.ne.s32.totalorder %s139, %s140
    %p152 = scmp.eq.s32.totalorder %s20, 1
    %p153 = por %p151, %p152
    %p155 = scmp.ne.s32.totalorder %s140, %s154
    %p156 = scmp.eq.s32.totalorder %s20, 0
    %p157 = por %p155, %p156
    %s159 = sadd.s32 %s158, 1
    %p162 = scmp.eq.s32.totalorder %s14, 1
    %p163 = scmp.ne.s32.totalorder %s158, %s160
    %p164 = scmp.eq.s32.totalorder %s14, 0
    %p165 = por %p163, %p164
    %p166 = scmp.ne.s32.totalorder %s158, %s160
    %p167 = scmp.eq.s32.totalorder %s19, 1
    %p168 = por %p166, %p167
    %p169 = scmp.ne.s32.totalorder %s160, %s161
    %p170 = scmp.eq.s32.totalorder %s19, 0
    %p171 = por %p169, %p170
    %p172 = scmp.ne.s32.totalorder %s160, %s161
    %p173 = scmp.eq.s32.totalorder %s20, 1
    %p174 = por %p172, %p173
    %p176 = scmp.ne.s32.totalorder %s161, %s175
    %p177 = scmp.eq.s32.totalorder %s20, 0
    %p178 = por %p176, %p177
    %s180 = sadd.s32 %s179, 1
    %p183 = scmp.eq.s32.totalorder %s14, 1
    %p184 = scmp.ne.s32.totalorder %s179, %s181
    %p185 = scmp.eq.s32.totalorder %s14, 0
    %p186 = por %p184, %p185
    %p187 = scmp.ne.s32.totalorder %s179, %s181
    %p188 = scmp.eq.s32.totalorder %s19, 1
    %p189 = por %p187, %p188
    %p190 = scmp.ne.s32.totalorder %s181, %s182
    %p191 = scmp.eq.s32.totalorder %s19, 0
    %p192 = por %p190, %p191
    %p193 = scmp.ne.s32.totalorder %s181, %s182
    %p194 = scmp.eq.s32.totalorder %s20, 1
    %p195 = por %p193, %p194
    %p197 = scmp.ne.s32.totalorder %s182, %s196
    %p198 = scmp.eq.s32.totalorder %s20, 0
    %p199 = por %p197, %p198
    %s200 = ssub.s32 %s14, %s21
    %p201 = scmp.eq.s32.totalorder %s200, 0
    %s203 = sadd.s32 %s202, 1
    %s204 = scalar_select %p201, %s202, %s203
    %p207 = pneg %p201
    %p208 = scmp.eq.s32.totalorder %s14, 1
    %p209 = por %p207, %p208
    %p210 = scmp.ne.s32.totalorder %s202, %s205
    %p211 = scmp.eq.s32.totalorder %s14, 0
    %p212 = por %p210, %p211
    %p213 = scmp.ne.s32.totalorder %s202, %s205
    %p214 = scmp.eq.s32.totalorder %s19, 1
    %p215 = por %p213, %p214
    %p216 = scmp.ne.s32.totalorder %s205, %s206
    %p217 = scmp.eq.s32.totalorder %s19, 0
    %p218 = por %p216, %p217
    %p219 = scmp.ne.s32.totalorder %s205, %s206
    %p220 = scmp.eq.s32.totalorder %s20, 1
    %p221 = por %p219, %p220
    %p223 = scmp.ne.s32.totalorder %s206, %s222
    %p224 = scmp.eq.s32.totalorder %s20, 0
    %p225 = por %p223, %p224
    %p226 = scmp.le.s32.totalorder 1, %s14
    %p227 = scmp.lt.s32.totalorder %s14, 3
    %p228 = pnand %p226, %p227
    %p229 = pneg %p228
    // Predicated region
    $region9: #{joint_layer_forward.1} parent=5 // pred_check
      _
    $region10: #{joint_layer_forward.1} parent=5 // pred_check_branch
      %231 = sbr.rel (%p228) target = $region12
    $region11: #{joint_layer_forward.1} parent=5 // pred_region
      %s232 = ssub.s32 %s14, 1
      // Predicated region
      $region13: #{joint_layer_forward.1} parent=11 // pred_check
        %p233 = pneg %p87
      $region14: #{joint_layer_forward.1} parent=11 // pred_check_branch
        %235 = sbr.rel (%p233) target = $region16
      $region15: #{joint_layer_forward.1} parent=11 // pred_region
        _
      $region16: #{joint_layer_forward.1} parent=11 // pred_fallthru
        _
      // Predicated region
      $region17: #{joint_layer_forward.1} parent=11 // pred_check
        %p236 = pneg %p108
      $region18: #{joint_layer_forward.1} parent=11 // pred_check_branch
        %238 = sbr.rel (%p236) target = $region20
      $region19: #{joint_layer_forward.1} parent=11 // pred_region
        _
      $region20: #{joint_layer_forward.1} parent=11 // pred_fallthru
        _
      // Predicated region
      $region21: #{joint_layer_forward.1} parent=11 // pred_check
        %p239 = pneg %p129
      $region22: #{joint_layer_forward.1} parent=11 // pred_check_branch
        %241 = sbr.rel (%p239) target = $region24
      $region23: #{joint_layer_forward.1} parent=11 // pred_region
        _
      $region24: #{joint_layer_forward.1} parent=11 // pred_fallthru
        _
      // Predicated region
      $region25: #{joint_layer_forward.1} parent=11 // pred_check
        %p242 = pneg %p150
      $region26: #{joint_layer_forward.1} parent=11 // pred_check_branch
        %244 = sbr.rel (%p242) target = $region28
      $region27: #{joint_layer_forward.1} parent=11 // pred_region
        _
      $region28: #{joint_layer_forward.1} parent=11 // pred_fallthru
        _
      // Predicated region
      $region29: #{joint_layer_forward.1} parent=11 // pred_check
        %p245 = pneg %p171
      $region30: #{joint_layer_forward.1} parent=11 // pred_check_branch
        %247 = sbr.rel (%p245) target = $region32
      $region31: #{joint_layer_forward.1} parent=11 // pred_region
        _
      $region32: #{joint_layer_forward.1} parent=11 // pred_fallthru
        _
      // Predicated region
      $region33: #{joint_layer_forward.1} parent=11 // pred_check
        %p248 = pneg %p192
      $region34: #{joint_layer_forward.1} parent=11 // pred_check_branch
        %250 = sbr.rel (%p248) target = $region36
      $region35: #{joint_layer_forward.1} parent=11 // pred_region
        _
      $region36: #{joint_layer_forward.1} parent=11 // pred_fallthru
        _
    $region12: #{joint_layer_forward.1} parent=5 // pred_fallthru
      _
    %p251 = scmp.lt.s32.totalorder %s14, 2
    // Predicated region
    $region37: #{joint_layer_forward.1} parent=5 // pred_check
      %p252 = pneg %p251
    $region38: #{joint_layer_forward.1} parent=5 // pred_check_branch
      %254 = sbr.rel (%p252) target = $region40
    $region39: #{joint_layer_forward.1} parent=5 // pred_region
      // Predicated region
      $region41: #{joint_layer_forward.1} parent=39 // pred_check
        %p255 = pneg %p34
      $region42: #{joint_layer_forward.1} parent=39 // pred_check_branch
        %257 = sbr.rel (%p255) target = $region44
      $region43: #{joint_layer_forward.1} parent=39 // pred_region
        %p258 = scmp.lt.s32.totalorder %s14, 1
        %s259 = scalar_select %p258, %s14, 1
        %s260 = smul.addr %s259, 4
        %s261 = smul.addr %s260, 8
        %s262 = scalar_lea.vmem %s0, %s261
      $region44: #{joint_layer_forward.1} parent=39 // pred_fallthru
        _
      // Predicated region
      $region45: #{joint_layer_forward.1} parent=39 // pred_check
        %p263 = pneg %p60
      $region46: #{joint_layer_forward.1} parent=39 // pred_check_branch
        %265 = sbr.rel (%p263) target = $region48
      $region47: #{joint_layer_forward.1} parent=39 // pred_region
        %p266 = scmp.lt.s32.totalorder %s14, 1
        %s267 = scalar_select %p266, %s14, 1
        %s268 = smul.addr %s267, 8
        %s269 = smul.addr %s268, 8
        %s270 = scalar_lea.vmem %s1, %s269
      $region48: #{joint_layer_forward.1} parent=39 // pred_fallthru
        _
    $region40: #{joint_layer_forward.1} parent=5 // pred_fallthru
      _
    %p271 = scmp.le.s32.totalorder 1, %s14
    %p272 = scmp.lt.s32.totalorder %s14, 3
    %p273 = pnand %p271, %p272
    %p274 = pneg %p273
    // Predicated region
    $region49: #{joint_layer_forward.1} parent=5 // pred_check
      _
    $region50: #{joint_layer_forward.1} parent=5 // pred_check_branch
      %276 = sbr.rel (%p273) target = $region52
    $region51: #{joint_layer_forward.1} parent=5 // pred_region
      %s277 = ssub.s32 %s14, 1
      %p278 = scmp.lt.s32.totalorder %s19, 1
      %s279 = scalar_select %p278, %s19, 1
      %s280 = smul.addr %s279, 4
      %s281 = smul.addr %s280, 8
      %s282 = scalar_lea.vmem %s0, %s281
      %p283 = pneg %p40
      %p284 = pneg %p37
      %p285 = scmp.lt.s32.totalorder %s19, 1
      %s286 = scalar_select %p285, %s19, 1
      %s287 = smul.addr %s286, 8
      %s288 = smul.addr %s287, 8
      %s289 = scalar_lea.vmem %s1, %s288
      %p290 = pneg %p66
      %p291 = pneg %p63
      %p292 = pneg %p87
      %p293 = pneg %p84
      %p294 = pneg %p108
      %p295 = pneg %p105
      %p296 = pneg %p129
      %p297 = pneg %p126
      %p298 = pneg %p150
      %p299 = pneg %p147
      %p300 = pneg %p171
      %p301 = pneg %p168
      %p302 = pneg %p192
      %p303 = pneg %p189
      %p304 = pneg %p218
      %p305 = pneg %p215
      %p306 = scmp.lt.s32.totalorder %s19, 1
      %s307 = scalar_select %p306, %s19, 1
      %s308 = smul.addr %s307, 4
      %s309 = smul.addr %s308, 8
      %s310 = scalar_lea.vmem %s8, %s309
      %p311 = scmp.lt.s32.totalorder %s19, 1
      %s312 = scalar_select %p311, %s19, 1
      %s313 = smul.addr %s312, 4
      %s314 = smul.addr %s313, 8
      %s315 = scalar_lea.vmem %s0, %s314
      %p316 = scmp.lt.s32.totalorder %s19, 1
      %s317 = scalar_select %p316, %s19, 1
      %s318 = smul.addr %s317, 8
      %s319 = smul.addr %s318, 8
      %s320 = scalar_lea.vmem %s1, %s319
      %p321 = scmp.lt.s32.totalorder %s19, 1
      %s322 = scalar_select %p321, %s19, 1
      %s323 = smul.addr %s322, 4
      %s324 = smul.addr %s323, 8
      %s325 = scalar_lea.vmem %s8, %s324
      %v326 = vld [vmem:[%s315] sm:$0xff]
      %v327 = vld [vmem:[%s315 + $0x8] sm:$0xff]
      %v328 = vld [vmem:[%s315 + $0x10] sm:$0xff]
      %v329 = vld [vmem:[%s315 + $0x18] sm:$0xff]
      %v330 = vld [vmem:[%s2] sm:$0xff]
      %v331 = vld [vmem:[%s3] sm:$0xff]
      %333 = vset.pattern.permute.xlu0 0
      %334 = vperm.xlu0 %333, %v331
      %v335 = vpop.permute.xlu0 %334
      %vm337 = vcmask 130048
      %v339 = vsel %vm337, %v330, 0
      %341 = vmatprep.subr.mxu0 %v327
      %342 = vmatpush1.msra.mxu0 %v326
      %343 = vmatprep.subr.mxu0 %v329
      %344 = vmatpush1.msra.mxu0 %v328
      %345 = vmatprep.subr.mxu0 0.0
      %346 = vmatpush1.msra.mxu0 0.0
      %347 = vmatprep.subr.mxu0 0.0
      %348 = vmatpush1.msra.mxu0 0.0
      %349 = vmatprep.subr.mxu0 0.0
      %350 = vmatpush1.msra.mxu0 0.0
      %351 = vmatprep.subr.mxu0 0.0
      %352 = vmatpush1.msra.mxu0 0.0
      %353 = vmatprep.subr.mxu0 0.0
      %354 = vmatpush1.msra.mxu0 0.0
      %355 = vmatprep.subr.mxu0 0.0
      %356 = vmatpush1.msra.mxu0 0.0
      %357 = vmatprep.subr.mxu0 0.0
      %358 = vmatpush1.msra.mxu0 0.0
      %359 = vmatprep.subr.mxu0 0.0
      %360 = vmatpush1.msra.mxu0 0.0
      %361 = vmatprep.subr.mxu0 0.0
      %362 = vmatpush1.msra.mxu0 0.0
      %363 = vmatprep.subr.mxu0 0.0
      %364 = vmatpush1.msra.mxu0 0.0
      %365 = vmatprep.subr.mxu0 0.0
      %366 = vmatpush1.msra.mxu0 0.0
      %367 = vmatprep.subr.mxu0 0.0
      %368 = vmatpush1.msra.mxu0 0.0
      %369 = vmatprep.subr.mxu0 0.0
      %370 = vmatpush1.msra.mxu0 0.0
      %371 = vmatprep.subr.mxu0 0.0
      %372 = vmatpush1.msra.mxu0 0.0
      %373 = vmatprep.subr.mxu0 0.0
      %374 = vmatpush1.msra.mxu0 0.0
      %375 = vmatprep.subr.mxu0 0.0
      %376 = vmatpush1.msra.mxu0 0.0
      %377 = vmatprep.subr.mxu0 0.0
      %378 = vmatpush1.msra.mxu0 0.0
      %379 = vmatprep.subr.mxu0 0.0
      %380 = vmatpush1.msra.mxu0 0.0
      %381 = vmatprep.subr.mxu0 0.0
      %382 = vmatpush1.msra.mxu0 0.0
      %383 = vmatprep.subr.mxu0 0.0
      %384 = vmatpush1.msra.mxu0 0.0
      %385 = vmatprep.subr.mxu0 0.0
      %386 = vmatpush1.msra.mxu0 0.0
      %387 = vmatprep.subr.mxu0 0.0
      %388 = vmatpush1.msra.mxu0 0.0
      %389 = vmatprep.subr.mxu0 0.0
      %390 = vmatpush1.msra.mxu0 0.0
      %391 = vmatprep.subr.mxu0 0.0
      %392 = vmatpush1.msra.mxu0 0.0
      %393 = vmatprep.subr.mxu0 0.0
      %394 = vmatpush1.msra.mxu0 0.0
      %395 = vmatprep.subr.mxu0 0.0
      %396 = vmatpush1.msra.mxu0 0.0
      %397 = vmatprep.subr.mxu0 0.0
      %398 = vmatpush1.msra.mxu0 0.0
      %399 = vmatprep.subr.mxu0 0.0
      %400 = vmatpush1.msra.mxu0 0.0
      %401 = vmatprep.subr.mxu0 0.0
      %402 = vmatpush1.msra.mxu0 0.0
      %403 = vmatprep.subr.mxu0 0.0
      %404 = vmatpush1.msra.mxu0 0.0
      %405 = vmatprep.mubr.f32.mxu0 0.0
      %406 = vmatmul.mubr.f32.gmra.mrb[0].mxu0 %v339
      %v407 = vpop.f32.mrb[0].mxu0
      %v408 = vadd.f32 %v335, %v407
      %v409 = vpop.f32.mrb[0].mxu0
      %v410 = vadd.f32 %v335, %v409
      %411 = vdwg.mxu0
      %v412 = vld [vmem:[%s4] sm:$0xff]
      %v413 = vld [vmem:[%s4 + $0x8] sm:$0xff]
      %v414 = vld [vmem:[%s320] sm:$0xff]
      %v415 = vld [vmem:[%s320 + $0x8] sm:$0xff]
      %v417 = vsel %vm337, %v412, 0
      %v420 = vsel %vm337, %v413, 0
      %422 = vmatprep.subr.mxu0 0.0
      %423 = vmatpush1.msra.mxu0 %v414
      %424 = vmatprep.subr.mxu0 0.0
      %425 = vmatpush1.msra.mxu0 %v415
      %426 = vmatprep.subr.mxu0 0.0
      %427 = vmatpush1.msra.mxu0 0.0
      %428 = vmatprep.subr.mxu0 0.0
      %429 = vmatpush1.msra.mxu0 0.0
      %430 = vmatprep.subr.mxu0 0.0
      %431 = vmatpush1.msra.mxu0 0.0
      %432 = vmatprep.subr.mxu0 0.0
      %433 = vmatpush1.msra.mxu0 0.0
      %434 = vmatprep.subr.mxu0 0.0
      %435 = vmatpush1.msra.mxu0 0.0
      %436 = vmatprep.subr.mxu0 0.0
      %437 = vmatpush1.msra.mxu0 0.0
      %438 = vmatprep.subr.mxu0 0.0
      %439 = vmatpush1.msra.mxu0 0.0
      %440 = vmatprep.subr.mxu0 0.0
      %441 = vmatpush1.msra.mxu0 0.0
      %442 = vmatprep.subr.mxu0 0.0
      %443 = vmatpush1.msra.mxu0 0.0
      %444 = vmatprep.subr.mxu0 0.0
      %445 = vmatpush1.msra.mxu0 0.0
      %446 = vmatprep.subr.mxu0 0.0
      %447 = vmatpush1.msra.mxu0 0.0
      %448 = vmatprep.subr.mxu0 0.0
      %449 = vmatpush1.msra.mxu0 0.0
      %450 = vmatprep.subr.mxu0 0.0
      %451 = vmatpush1.msra.mxu0 0.0
      %452 = vmatprep.subr.mxu0 0.0
      %453 = vmatpush1.msra.mxu0 0.0
      %454 = vmatprep.subr.mxu0 0.0
      %455 = vmatpush1.msra.mxu0 0.0
      %456 = vmatprep.subr.mxu0 0.0
      %457 = vmatpush1.msra.mxu0 0.0
      %458 = vmatprep.subr.mxu0 0.0
      %459 = vmatpush1.msra.mxu0 0.0
      %460 = vmatprep.subr.mxu0 0.0
      %461 = vmatpush1.msra.mxu0 0.0
      %462 = vmatprep.subr.mxu0 0.0
      %463 = vmatpush1.msra.mxu0 0.0
      %464 = vmatprep.subr.mxu0 0.0
      %465 = vmatpush1.msra.mxu0 0.0
      %466 = vmatprep.subr.mxu0 0.0
      %467 = vmatpush1.msra.mxu0 0.0
      %468 = vmatprep.subr.mxu0 0.0
      %469 = vmatpush1.msra.mxu0 0.0
      %470 = vmatprep.subr.mxu0 0.0
      %471 = vmatpush1.msra.mxu0 0.0
      %472 = vmatprep.subr.mxu0 0.0
      %473 = vmatpush1.msra.mxu0 0.0
      %474 = vmatprep.subr.mxu0 0.0
      %475 = vmatpush1.msra.mxu0 0.0
      %476 = vmatprep.subr.mxu0 0.0
      %477 = vmatpush1.msra.mxu0 0.0
      %478 = vmatprep.subr.mxu0 0.0
      %479 = vmatpush1.msra.mxu0 0.0
      %480 = vmatprep.subr.mxu0 0.0
      %481 = vmatpush1.msra.mxu0 0.0
      %482 = vmatprep.subr.mxu0 0.0
      %483 = vmatpush1.msra.mxu0 0.0
      %484 = vmatprep.subr.mxu0 0.0
      %485 = vmatpush1.msra.mxu0 0.0
      %486 = vmatprep.mubr.f32.mxu0 0.0
      %487 = vmatmul.mubr.f32.gmra.mrb[0].mxu0 %v417
      %v488 = vpop.f32.mrb[0].mxu0
      %v489 = vadd.f32 0.0, %v488
      %v490 = vpop.f32.mrb[0].mxu0
      %491 = vmatprep.mubr.f32.mxu0 0.0
      %492 = vmatmul.mubr.f32.gmra.mrb[0].mxu0 %v420
      %v493 = vpop.f32.mrb[0].mxu0
      %v494 = vadd.f32 0.0, %v493
      %v495 = vpop.f32.mrb[0].mxu0
      %496 = vdwg.mxu0
      %s497 = scalar_lea.vmem %s320, 16
      %v498 = vld [vmem:[%s497] sm:$0xff]
      %v499 = vld [vmem:[%s497 + $0x8] sm:$0xff]
      %500 = vmatprep.subr.mxu0 0.0
      %501 = vmatpush1.msra.mxu0 %v498
      %502 = vmatprep.subr.mxu0 0.0
      %503 = vmatpush1.msra.mxu0 %v499
      %504 = vmatprep.subr.mxu0 0.0
      %505 = vmatpush1.msra.mxu0 0.0
      %506 = vmatprep.subr.mxu0 0.0
      %507 = vmatpush1.msra.mxu0 0.0
      %508 = vmatprep.subr.mxu0 0.0
      %509 = vmatpush1.msra.mxu0 0.0
      %510 = vmatprep.subr.mxu0 0.0
      %511 = vmatpush1.msra.mxu0 0.0
      %512 = vmatprep.subr.mxu0 0.0
      %513 = vmatpush1.msra.mxu0 0.0
      %514 = vmatprep.subr.mxu0 0.0
      %515 = vmatpush1.msra.mxu0 0.0
      %516 = vmatprep.subr.mxu0 0.0
      %517 = vmatpush1.msra.mxu0 0.0
      %518 = vmatprep.subr.mxu0 0.0
      %519 = vmatpush1.msra.mxu0 0.0
      %520 = vmatprep.subr.mxu0 0.0
      %521 = vmatpush1.msra.mxu0 0.0
      %522 = vmatprep.subr.mxu0 0.0
      %523 = vmatpush1.msra.mxu0 0.0
      %524 = vmatprep.subr.mxu0 0.0
      %525 = vmatpush1.msra.mxu0 0.0
      %526 = vmatprep.subr.mxu0 0.0
      %527 = vmatpush1.msra.mxu0 0.0
      %528 = vmatprep.subr.mxu0 0.0
      %529 = vmatpush1.msra.mxu0 0.0
      %530 = vmatprep.subr.mxu0 0.0
      %531 = vmatpush1.msra.mxu0 0.0
      %532 = vmatprep.subr.mxu0 0.0
      %533 = vmatpush1.msra.mxu0 0.0
      %534 = vmatprep.subr.mxu0 0.0
      %535 = vmatpush1.msra.mxu0 0.0
      %536 = vmatprep.subr.mxu0 0.0
      %537 = vmatpush1.msra.mxu0 0.0
      %538 = vmatprep.subr.mxu0 0.0
      %539 = vmatpush1.msra.mxu0 0.0
      %540 = vmatprep.subr.mxu0 0.0
      %541 = vmatpush1.msra.mxu0 0.0
      %542 = vmatprep.subr.mxu0 0.0
      %543 = vmatpush1.msra.mxu0 0.0
      %544 = vmatprep.subr.mxu0 0.0
      %545 = vmatpush1.msra.mxu0 0.0
      %546 = vmatprep.subr.mxu0 0.0
      %547 = vmatpush1.msra.mxu0 0.0
      %548 = vmatprep.subr.mxu0 0.0
      %549 = vmatpush1.msra.mxu0 0.0
      %550 = vmatprep.subr.mxu0 0.0
      %551 = vmatpush1.msra.mxu0 0.0
      %552 = vmatprep.subr.mxu0 0.0
      %553 = vmatpush1.msra.mxu0 0.0
      %554 = vmatprep.subr.mxu0 0.0
      %555 = vmatpush1.msra.mxu0 0.0
      %556 = vmatprep.subr.mxu0 0.0
      %557 = vmatpush1.msra.mxu0 0.0
      %558 = vmatprep.subr.mxu0 0.0
      %559 = vmatpush1.msra.mxu0 0.0
      %560 = vmatprep.subr.mxu0 0.0
      %561 = vmatpush1.msra.mxu0 0.0
      %562 = vmatprep.subr.mxu0 0.0
      %563 = vmatpush1.msra.mxu0 0.0
      %564 = vmatprep.mubr.f32.mxu0 0.0
      %565 = vmatmul.mubr.f32.gmra.mrb[0].mxu0 %v417
      %v566 = vpop.f32.mrb[0].mxu0
      %v567 = vadd.f32 0.0, %v566
      %v568 = vpop.f32.mrb[0].mxu0
      %569 = vmatprep.mubr.f32.mxu0 0.0
      %570 = vmatmul.mubr.f32.gmra.mrb[0].mxu0 %v420
      %v571 = vpop.f32.mrb[0].mxu0
      %v572 = vadd.f32 0.0, %v571
      %v573 = vpop.f32.mrb[0].mxu0
      %574 = vdwg.mxu0
      %v575 = vmax.f32 %v489, %v567
      %v576 = vmax.f32 %v494, %v572
      %s577 = scalar_lea.vmem %s320, 32
      %v578 = vld [vmem:[%s577] sm:$0xff]
      %v579 = vld [vmem:[%s577 + $0x8] sm:$0xff]
      %580 = vmatprep.subr.mxu0 0.0
      %581 = vmatpush1.msra.mxu0 %v578
      %582 = vmatprep.subr.mxu0 0.0
      %583 = vmatpush1.msra.mxu0 %v579
      %584 = vmatprep.subr.mxu0 0.0
      %585 = vmatpush1.msra.mxu0 0.0
      %586 = vmatprep.subr.mxu0 0.0
      %587 = vmatpush1.msra.mxu0 0.0
      %588 = vmatprep.subr.mxu0 0.0
      %589 = vmatpush1.msra.mxu0 0.0
      %590 = vmatprep.subr.mxu0 0.0
      %591 = vmatpush1.msra.mxu0 0.0
      %592 = vmatprep.subr.mxu0 0.0
      %593 = vmatpush1.msra.mxu0 0.0
      %594 = vmatprep.subr.mxu0 0.0
      %595 = vmatpush1.msra.mxu0 0.0
      %596 = vmatprep.subr.mxu0 0.0
      %597 = vmatpush1.msra.mxu0 0.0
      %598 = vmatprep.subr.mxu0 0.0
      %599 = vmatpush1.msra.mxu0 0.0
      %600 = vmatprep.subr.mxu0 0.0
      %601 = vmatpush1.msra.mxu0 0.0
      %602 = vmatprep.subr.mxu0 0.0
      %603 = vmatpush1.msra.mxu0 0.0
      %604 = vmatprep.subr.mxu0 0.0
      %605 = vmatpush1.msra.mxu0 0.0
      %606 = vmatprep.subr.mxu0 0.0
      %607 = vmatpush1.msra.mxu0 0.0
      %608 = vmatprep.subr.mxu0 0.0
      %609 = vmatpush1.msra.mxu0 0.0
      %610 = vmatprep.subr.mxu0 0.0
      %611 = vmatpush1.msra.mxu0 0.0
      %612 = vmatprep.subr.mxu0 0.0
      %613 = vmatpush1.msra.mxu0 0.0
      %614 = vmatprep.subr.mxu0 0.0
      %615 = vmatpush1.msra.mxu0 0.0
      %616 = vmatprep.subr.mxu0 0.0
      %617 = vmatpush1.msra.mxu0 0.0
      %618 = vmatprep.subr.mxu0 0.0
      %619 = vmatpush1.msra.mxu0 0.0
      %620 = vmatprep.subr.mxu0 0.0
      %621 = vmatpush1.msra.mxu0 0.0
      %622 = vmatprep.subr.mxu0 0.0
      %623 = vmatpush1.msra.mxu0 0.0
      %624 = vmatprep.subr.mxu0 0.0
      %625 = vmatpush1.msra.mxu0 0.0
      %626 = vmatprep.subr.mxu0 0.0
      %627 = vmatpush1.msra.mxu0 0.0
      %628 = vmatprep.subr.mxu0 0.0
      %629 = vmatpush1.msra.mxu0 0.0
      %630 = vmatprep.subr.mxu0 0.0
      %631 = vmatpush1.msra.mxu0 0.0
      %632 = vmatprep.subr.mxu0 0.0
      %633 = vmatpush1.msra.mxu0 0.0
      %634 = vmatprep.subr.mxu0 0.0
      %635 = vmatpush1.msra.mxu0 0.0
      %636 = vmatprep.subr.mxu0 0.0
      %637 = vmatpush1.msra.mxu0 0.0
      %638 = vmatprep.subr.mxu0 0.0
      %639 = vmatpush1.msra.mxu0 0.0
      %640 = vmatprep.subr.mxu0 0.0
      %641 = vmatpush1.msra.mxu0 0.0
      %642 = vmatprep.subr.mxu0 0.0
      %643 = vmatpush1.msra.mxu0 0.0
      %644 = vmatprep.mubr.f32.mxu0 0.0
      %645 = vmatmul.mubr.f32.gmra.mrb[0].mxu0 %v417
      %v646 = vpop.f32.mrb[0].mxu0
      %v647 = vadd.f32 0.0, %v646
      %v648 = vpop.f32.mrb[0].mxu0
      %649 = vmatprep.mubr.f32.mxu0 0.0
      %650 = vmatmul.mubr.f32.gmra.mrb[0].mxu0 %v420
      %v651 = vpop.f32.mrb[0].mxu0
      %v652 = vadd.f32 0.0, %v651
      %v653 = vpop.f32.mrb[0].mxu0
      %654 = vdwg.mxu0
      %v655 = vmax.f32 %v575, %v647
      %v656 = vmax.f32 %v576, %v652
      %s657 = scalar_lea.vmem %s320, 48
      %v658 = vld [vmem:[%s657] sm:$0xff]
      %v659 = vld [vmem:[%s657 + $0x8] sm:$0xff]
      %660 = vmatprep.subr.mxu0 0.0
      %661 = vmatpush1.msra.mxu0 %v658
      %662 = vmatprep.subr.mxu0 0.0
      %663 = vmatpush1.msra.mxu0 %v659
      %664 = vmatprep.subr.mxu0 0.0
      %665 = vmatpush1.msra.mxu0 0.0
      %666 = vmatprep.subr.mxu0 0.0
      %667 = vmatpush1.msra.mxu0 0.0
      %668 = vmatprep.subr.mxu0 0.0
      %669 = vmatpush1.msra.mxu0 0.0
      %670 = vmatprep.subr.mxu0 0.0
      %671 = vmatpush1.msra.mxu0 0.0
      %672 = vmatprep.subr.mxu0 0.0
      %673 = vmatpush1.msra.mxu0 0.0
      %674 = vmatprep.subr.mxu0 0.0
      %675 = vmatpush1.msra.mxu0 0.0
      %676 = vmatprep.subr.mxu0 0.0
      %677 = vmatpush1.msra.mxu0 0.0
      %678 = vmatprep.subr.mxu0 0.0
      %679 = vmatpush1.msra.mxu0 0.0
      %680 = vmatprep.subr.mxu0 0.0
      %681 = vmatpush1.msra.mxu0 0.0
      %682 = vmatprep.subr.mxu0 0.0
      %683 = vmatpush1.msra.mxu0 0.0
      %684 = vmatprep.subr.mxu0 0.0
      %685 = vmatpush1.msra.mxu0 0.0
      %686 = vmatprep.subr.mxu0 0.0
      %687 = vmatpush1.msra.mxu0 0.0
      %688 = vmatprep.subr.mxu0 0.0
      %689 = vmatpush1.msra.mxu0 0.0
      %690 = vmatprep.subr.mxu0 0.0
      %691 = vmatpush1.msra.mxu0 0.0
      %692 = vmatprep.subr.mxu0 0.0
      %693 = vmatpush1.msra.mxu0 0.0
      %694 = vmatprep.subr.mxu0 0.0
      %695 = vmatpush1.msra.mxu0 0.0
      %696 = vmatprep.subr.mxu0 0.0
      %697 = vmatpush1.msra.mxu0 0.0
      %698 = vmatprep.subr.mxu0 0.0
      %699 = vmatpush1.msra.mxu0 0.0
      %700 = vmatprep.subr.mxu0 0.0
      %701 = vmatpush1.msra.mxu0 0.0
      %702 = vmatprep.subr.mxu0 0.0
      %703 = vmatpush1.msra.mxu0 0.0
      %704 = vmatprep.subr.mxu0 0.0
      %705 = vmatpush1.msra.mxu0 0.0
      %706 = vmatprep.subr.mxu0 0.0
      %707 = vmatpush1.msra.mxu0 0.0
      %708 = vmatprep.subr.mxu0 0.0
      %709 = vmatpush1.msra.mxu0 0.0
      %710 = vmatprep.subr.mxu0 0.0
      %711 = vmatpush1.msra.mxu0 0.0
      %712 = vmatprep.subr.mxu0 0.0
      %713 = vmatpush1.msra.mxu0 0.0
      %714 = vmatprep.subr.mxu0 0.0
      %715 = vmatpush1.msra.mxu0 0.0
      %716 = vmatprep.subr.mxu0 0.0
      %717 = vmatpush1.msra.mxu0 0.0
      %718 = vmatprep.subr.mxu0 0.0
      %719 = vmatpush1.msra.mxu0 0.0
      %720 = vmatprep.subr.mxu0 0.0
      %721 = vmatpush1.msra.mxu0 0.0
      %722 = vmatprep.subr.mxu0 0.0
      %723 = vmatpush1.msra.mxu0 0.0
      %724 = vmatprep.mubr.f32.mxu0 0.0
      %725 = vmatmul.mubr.f32.gmra.mrb[0].mxu0 %v417
      %v726 = vpop.f32.mrb[0].mxu0
      %v727 = vadd.f32 0.0, %v726
      %v728 = vpop.f32.mrb[0].mxu0
      %729 = vmatprep.mubr.f32.mxu0 0.0
      %730 = vmatmul.mubr.f32.gmra.mrb[0].mxu0 %v420
      %v731 = vpop.f32.mrb[0].mxu0
      %v732 = vadd.f32 0.0, %v731
      %v733 = vpop.f32.mrb[0].mxu0
      %734 = vdwg.mxu0
      %v735 = vmax.f32 %v655, %v727
      %v736 = vmax.f32 %v656, %v732
      %v737 = vld [vmem:[%s5] sm:$0xff]
      %v738 = vld [vmem:[%s5 + $0x8] sm:$0xff]
      %740 = vset.pattern.permute.xlu0 0
      %741 = vperm.xlu0 %740, %v737
      %v742 = vpop.permute.xlu0 %741
      %745 = vset.pattern.permute.xlu0 0
      %746 = vperm.xlu0 %745, %v738
      %v747 = vpop.permute.xlu0 %746
      %v749 = vadd.f32 %v735, %v742
      %v750 = vadd.f32 %v736, %v747
      %751 = vxpose.xlu0.b32.start [1/16] %v408, 128
      %752 = vxpose.xlu0.b32.cont [2/16] 0.0, 128
      %753 = vxpose.xlu0.b32.cont [3/16] 0.0, 128
      %754 = vxpose.xlu0.b32.cont [4/16] 0.0, 128
      %755 = vxpose.xlu0.b32.cont [5/16] 0.0, 128
      %756 = vxpose.xlu0.b32.cont [6/16] 0.0, 128
      %757 = vxpose.xlu0.b32.cont [7/16] 0.0, 128
      %758 = vxpose.xlu0.b32.cont [8/16] 0.0, 128
      %759 = vxpose.xlu0.b32.cont [9/16] 0.0, 128
      %760 = vxpose.xlu0.b32.cont [10/16] 0.0, 128
      %761 = vxpose.xlu0.b32.cont [11/16] 0.0, 128
      %762 = vxpose.xlu0.b32.cont [12/16] 0.0, 128
      %763 = vxpose.xlu0.b32.cont [13/16] 0.0, 128
      %764 = vxpose.xlu0.b32.cont [14/16] 0.0, 128
      %765 = vxpose.xlu0.b32.cont [15/16] 0.0, 128
      %766 = vxpose.xlu0.b32.end [16/16] 0.0, 128
      %v767 = vpop.trf.xlu0
      %v768 = vpop.trf.xlu0
      %v769 = vpop.trf.xlu0
      %v770 = vpop.trf.xlu0
      %v771 = vpop.trf.xlu0
      %v772 = vpop.trf.xlu0
      %v773 = vpop.trf.xlu0
      %v774 = vpop.trf.xlu0
      %v775 = vpop.trf.xlu0
      %v776 = vpop.trf.xlu0
      %v777 = vpop.trf.xlu0
      %v778 = vpop.trf.xlu0
      %v779 = vpop.trf.xlu0
      %v780 = vpop.trf.xlu0
      %v781 = vpop.trf.xlu0
      %v782 = vpop.trf.xlu0
      %783 = vxpose.xlu0.b32.start [1/16] %v410, 128
      %784 = vxpose.xlu0.b32.cont [2/16] 0.0, 128
      %785 = vxpose.xlu0.b32.cont [3/16] 0.0, 128
      %786 = vxpose.xlu0.b32.cont [4/16] 0.0, 128
      %787 = vxpose.xlu0.b32.cont [5/16] 0.0, 128
      %788 = vxpose.xlu0.b32.cont [6/16] 0.0, 128
      %789 = vxpose.xlu0.b32.cont [7/16] 0.0, 128
      %790 = vxpose.xlu0.b32.cont [8/16] 0.0, 128
      %791 = vxpose.xlu0.b32.cont [9/16] 0.0, 128
      %792 = vxpose.xlu0.b32.cont [10/16] 0.0, 128
      %793 = vxpose.xlu0.b32.cont [11/16] 0.0, 128
      %794 = vxpose.xlu0.b32.cont [12/16] 0.0, 128
      %795 = vxpose.xlu0.b32.cont [13/16] 0.0, 128
      %796 = vxpose.xlu0.b32.cont [14/16] 0.0, 128
      %797 = vxpose.xlu0.b32.cont [15/16] 0.0, 128
      %798 = vxpose.xlu0.b32.end [16/16] 0.0, 128
      %v799 = vpop.trf.xlu0
      %v800 = vpop.trf.xlu0
      %v801 = vpop.trf.xlu0
      %v802 = vpop.trf.xlu0
      %v803 = vpop.trf.xlu0
      %v804 = vpop.trf.xlu0
      %v805 = vpop.trf.xlu0
      %v806 = vpop.trf.xlu0
      %v807 = vpop.trf.xlu0
      %v808 = vpop.trf.xlu0
      %v809 = vpop.trf.xlu0
      %v810 = vpop.trf.xlu0
      %v811 = vpop.trf.xlu0
      %v812 = vpop.trf.xlu0
      %v813 = vpop.trf.xlu0
      %v814 = vpop.trf.xlu0
      %vm815 = vcmask 64512
      %v817 = vsel %vm815, %v767, 0
      %v820 = vsel %vm815, %v768, 0
      %v823 = vsel %vm815, %v769, 0
      %v826 = vsel %vm815, %v770, 0
      %v829 = vsel %vm815, %v771, 0
      %v832 = vsel %vm815, %v772, 0
      %v835 = vsel %vm815, %v773, 0
      %v838 = vsel %vm815, %v774, 0
      %v841 = vsel %vm815, %v775, 0
      %v844 = vsel %vm815, %v776, 0
      %v847 = vsel %vm815, %v777, 0
      %v850 = vsel %vm815, %v778, 0
      %v853 = vsel %vm815, %v779, 0
      %v856 = vsel %vm815, %v780, 0
      %v859 = vsel %vm815, %v781, 0
      %v862 = vsel %vm815, %v782, 0
      %v865 = vsel %vm815, %v799, 0
      %v868 = vsel %vm815, %v800, 0
      %v871 = vsel %vm815, %v801, 0
      %v874 = vsel %vm815, %v802, 0
      %v877 = vsel %vm815, %v803, 0
      %v880 = vsel %vm815, %v804, 0
      %v883 = vsel %vm815, %v805, 0
      %v886 = vsel %vm815, %v806, 0
      %v889 = vsel %vm815, %v807, 0
      %v892 = vsel %vm815, %v808, 0
      %v895 = vsel %vm815, %v809, 0
      %v898 = vsel %vm815, %v810, 0
      %v901 = vsel %vm815, %v811, 0
      %v904 = vsel %vm815, %v812, 0
      %v907 = vsel %vm815, %v813, 0
      %v910 = vsel %vm815, %v814, 0
      %912 = vmatprep.subr.mxu0 0.0
      %913 = vmatpush1.msra.mxu0 %v749
      %914 = vmatprep.subr.mxu0 0.0
      %915 = vmatpush1.msra.mxu0 0.0
      %916 = vmatprep.subr.mxu0 0.0
      %917 = vmatpush1.msra.mxu0 0.0
      %918 = vmatprep.subr.mxu0 0.0
      %919 = vmatpush1.msra.mxu0 0.0
      %920 = vmatprep.subr.mxu0 0.0
      %921 = vmatpush1.msra.mxu0 0.0
      %922 = vmatprep.subr.mxu0 0.0
      %923 = vmatpush1.msra.mxu0 0.0
      %924 = vmatprep.subr.mxu0 0.0
      %925 = vmatpush1.msra.mxu0 0.0
      %926 = vmatprep.subr.mxu0 0.0
      %927 = vmatpush1.msra.mxu0 0.0
      %928 = vmatprep.subr.mxu0 0.0
      %929 = vmatpush1.msra.mxu0 0.0
      %930 = vmatprep.subr.mxu0 0.0
      %931 = vmatpush1.msra.mxu0 0.0
      %932 = vmatprep.subr.mxu0 0.0
      %933 = vmatpush1.msra.mxu0 0.0
      %934 = vmatprep.subr.mxu0 0.0
      %935 = vmatpush1.msra.mxu0 0.0
      %936 = vmatprep.subr.mxu0 0.0
      %937 = vmatpush1.msra.mxu0 0.0
      %938 = vmatprep.subr.mxu0 0.0
      %939 = vmatpush1.msra.mxu0 0.0
      %940 = vmatprep.subr.mxu0 0.0
      %941 = vmatpush1.msra.mxu0 0.0
      %942 = vmatprep.subr.mxu0 0.0
      %943 = vmatpush1.msra.mxu0 0.0
      %944 = vmatprep.subr.mxu0 0.0
      %945 = vmatpush1.msra.mxu0 0.0
      %946 = vmatprep.subr.mxu0 0.0
      %947 = vmatpush1.msra.mxu0 0.0
      %948 = vmatprep.subr.mxu0 0.0
      %949 = vmatpush1.msra.mxu0 0.0
      %950 = vmatprep.subr.mxu0 0.0
      %951 = vmatpush1.msra.mxu0 0.0
      %952 = vmatprep.subr.mxu0 0.0
      %953 = vmatpush1.msra.mxu0 0.0
      %954 = vmatprep.subr.mxu0 0.0
      %955 = vmatpush1.msra.mxu0 0.0
      %956 = vmatprep.subr.mxu0 0.0
      %957 = vmatpush1.msra.mxu0 0.0
      %958 = vmatprep.subr.mxu0 0.0
      %959 = vmatpush1.msra.mxu0 0.0
      %960 = vmatprep.subr.mxu0 0.0
      %961 = vmatpush1.msra.mxu0 0.0
      %962 = vmatprep.subr.mxu0 0.0
      %963 = vmatpush1.msra.mxu0 0.0
      %964 = vmatprep.subr.mxu0 0.0
      %965 = vmatpush1.msra.mxu0 0.0
      %966 = vmatprep.subr.mxu0 0.0
      %967 = vmatpush1.msra.mxu0 0.0
      %968 = vmatprep.subr.mxu0 0.0
      %969 = vmatpush1.msra.mxu0 0.0
      %970 = vmatprep.subr.mxu0 0.0
      %971 = vmatpush1.msra.mxu0 0.0
      %972 = vmatprep.subr.mxu0 0.0
      %973 = vmatpush1.msra.mxu0 0.0
      %974 = vmatprep.subr.mxu0 0.0
      %975 = vmatpush1.msra.mxu0 0.0
      %976 = vmatprep.mubr.f32.mxu0 0.0
      %977 = vmatmul.mubr.f32.gmra.mrb[0].mxu0 %v817
      %v978 = vpop.f32.mrb[0].mxu0
      %v979 = vadd.f32 0.0, %v978
      %v980 = vpop.f32.mrb[0].mxu0
      %981 = vmatprep.mubr.f32.mxu0 0.0
      %982 = vmatmul.mubr.f32.gmra.mrb[0].mxu0 %v820
      %v983 = vpop.f32.mrb[0].mxu0
      %v984 = vadd.f32 0.0, %v983
      %v985 = vpop.f32.mrb[0].mxu0
      %986 = vmatprep.mubr.f32.mxu0 0.0
      %987 = vmatmul.mubr.f32.gmra.mrb[0].mxu0 %v823
      %v988 = vpop.f32.mrb[0].mxu0
      %v989 = vadd.f32 0.0, %v988
      %v990 = vpop.f32.mrb[0].mxu0
      %991 = vmatprep.mubr.f32.mxu0 0.0
      %992 = vmatmul.mubr.f32.gmra.mrb[0].mxu0 %v826
      %v993 = vpop.f32.mrb[0].mxu0
      %v994 = vadd.f32 0.0, %v993
      %v995 = vpop.f32.mrb[0].mxu0
      %996 = vmatprep.mubr.f32.mxu0 0.0
      %997 = vmatmul.mubr.f32.gmra.mrb[0].mxu0 %v829
      %v998 = vpop.f32.mrb[0].mxu0
      %v999 = vadd.f32 0.0, %v998
      %v1000 = vpop.f32.mrb[0].mxu0
      %1001 = vmatprep.mubr.f32.mxu0 0.0
      %1002 = vmatmul.mubr.f32.gmra.mrb[0].mxu0 %v832
      %v1003 = vpop.f32.mrb[0].mxu0
      %v1004 = vadd.f32 0.0, %v1003
      %v1005 = vpop.f32.mrb[0].mxu0
      %1006 = vmatprep.mubr.f32.mxu0 0.0
      %1007 = vmatmul.mubr.f32.gmra.mrb[0].mxu0 %v835
      %v1008 = vpop.f32.mrb[0].mxu0
      %v1009 = vadd.f32 0.0, %v1008
      %v1010 = vpop.f32.mrb[0].mxu0
      %1011 = vmatprep.mubr.f32.mxu0 0.0
      %1012 = vmatmul.mubr.f32.gmra.mrb[0].mxu0 %v838
      %v1013 = vpop.f32.mrb[0].mxu0
      %v1014 = vadd.f32 0.0, %v1013
      %v1015 = vpop.f32.mrb[0].mxu0
      %1016 = vmatprep.mubr.f32.mxu0 0.0
      %1017 = vmatmul.mubr.f32.gmra.mrb[0].mxu0 %v841
      %v1018 = vpop.f32.mrb[0].mxu0
      %v1019 = vadd.f32 0.0, %v1018
      %v1020 = vpop.f32.mrb[0].mxu0
      %1021 = vmatprep.mubr.f32.mxu0 0.0
      %1022 = vmatmul.mubr.f32.gmra.mrb[0].mxu0 %v844
      %v1023 = vpop.f32.mrb[0].mxu0
      %v1024 = vadd.f32 0.0, %v1023
      %v1025 = vpop.f32.mrb[0].mxu0
      %1026 = vmatprep.mubr.f32.mxu0 0.0
      %1027 = vmatmul.mubr.f32.gmra.mrb[0].mxu0 %v847
      %v1028 = vpop.f32.mrb[0].mxu0
      %v1029 = vadd.f32 0.0, %v1028
      %v1030 = vpop.f32.mrb[0].mxu0
      %1031 = vmatprep.mubr.f32.mxu0 0.0
      %1032 = vmatmul.mubr.f32.gmra.mrb[0].mxu0 %v850
      %v1033 = vpop.f32.mrb[0].mxu0
      %v1034 = vadd.f32 0.0, %v1033
      %v1035 = vpop.f32.mrb[0].mxu0
      %1036 = vmatprep.mubr.f32.mxu0 0.0
      %1037 = vmatmul.mubr.f32.gmra.mrb[0].mxu0 %v853
      %v1038 = vpop.f32.mrb[0].mxu0
      %v1039 = vadd.f32 0.0, %v1038
      %v1040 = vpop.f32.mrb[0].mxu0
      %1041 = vmatprep.mubr.f32.mxu0 0.0
      %1042 = vmatmul.mubr.f32.gmra.mrb[0].mxu0 %v856
      %v1043 = vpop.f32.mrb[0].mxu0
      %v1044 = vadd.f32 0.0, %v1043
      %v1045 = vpop.f32.mrb[0].mxu0
      %1046 = vmatprep.mubr.f32.mxu0 0.0
      %1047 = vmatmul.mubr.f32.gmra.mrb[0].mxu0 %v859
      %v1048 = vpop.f32.mrb[0].mxu0
      %v1049 = vadd.f32 0.0, %v1048
      %v1050 = vpop.f32.mrb[0].mxu0
      %1051 = vmatprep.mubr.f32.mxu0 0.0
      %1052 = vmatmul.mubr.f32.gmra.mrb[0].mxu0 %v862
      %v1053 = vpop.f32.mrb[0].mxu0
      %v1054 = vadd.f32 0.0, %v1053
      %v1055 = vpop.f32.mrb[0].mxu0
      %1056 = vmatprep.mubr.f32.mxu0 0.0
      %1057 = vmatmul.mubr.f32.gmra.mrb[0].mxu0 %v865
      %v1058 = vpop.f32.mrb[0].mxu0
      %v1059 = vadd.f32 0.0, %v1058
      %v1060 = vpop.f32.mrb[0].mxu0
      %1061 = vmatprep.mubr.f32.mxu0 0.0
      %1062 = vmatmul.mubr.f32.gmra.mrb[0].mxu0 %v868
      %v1063 = vpop.f32.mrb[0].mxu0
      %v1064 = vadd.f32 0.0, %v1063
      %v1065 = vpop.f32.mrb[0].mxu0
      %1066 = vmatprep.mubr.f32.mxu0 0.0
      %1067 = vmatmul.mubr.f32.gmra.mrb[0].mxu0 %v871
      %v1068 = vpop.f32.mrb[0].mxu0
      %v1069 = vadd.f32 0.0, %v1068
      %v1070 = vpop.f32.mrb[0].mxu0
      %1071 = vmatprep.mubr.f32.mxu0 0.0
      %1072 = vmatmul.mubr.f32.gmra.mrb[0].mxu0 %v874
      %v1073 = vpop.f32.mrb[0].mxu0
      %v1074 = vadd.f32 0.0, %v1073
      %v1075 = vpop.f32.mrb[0].mxu0
      %1076 = vmatprep.mubr.f32.mxu0 0.0
      %1077 = vmatmul.mubr.f32.gmra.mrb[0].mxu0 %v877
      %v1078 = vpop.f32.mrb[0].mxu0
      %v1079 = vadd.f32 0.0, %v1078
      %v1080 = vpop.f32.mrb[0].mxu0
      %1081 = vmatprep.mubr.f32.mxu0 0.0
      %1082 = vmatmul.mubr.f32.gmra.mrb[0].mxu0 %v880
      %v1083 = vpop.f32.mrb[0].mxu0
      %v1084 = vadd.f32 0.0, %v1083
      %v1085 = vpop.f32.mrb[0].mxu0
      %1086 = vmatprep.mubr.f32.mxu0 0.0
      %1087 = vmatmul.mubr.f32.gmra.mrb[0].mxu0 %v883
      %v1088 = vpop.f32.mrb[0].mxu0
      %v1089 = vadd.f32 0.0, %v1088
      %v1090 = vpop.f32.mrb[0].mxu0
      %1091 = vmatprep.mubr.f32.mxu0 0.0
      %1092 = vmatmul.mubr.f32.gmra.mrb[0].mxu0 %v886
      %v1093 = vpop.f32.mrb[0].mxu0
      %v1094 = vadd.f32 0.0, %v1093
      %v1095 = vpop.f32.mrb[0].mxu0
      %1096 = vmatprep.mubr.f32.mxu0 0.0
      %1097 = vmatmul.mubr.f32.gmra.mrb[0].mxu0 %v889
      %v1098 = vpop.f32.mrb[0].mxu0
      %v1099 = vadd.f32 0.0, %v1098
      %v1100 = vpop.f32.mrb[0].mxu0
      %1101 = vmatprep.mubr.f32.mxu0 0.0
      %1102 = vmatmul.mubr.f32.gmra.mrb[0].mxu0 %v892
      %v1103 = vpop.f32.mrb[0].mxu0
      %v1104 = vadd.f32 0.0, %v1103
      %v1105 = vpop.f32.mrb[0].mxu0
      %1106 = vmatprep.mubr.f32.mxu0 0.0
      %1107 = vmatmul.mubr.f32.gmra.mrb[0].mxu0 %v895
      %v1108 = vpop.f32.mrb[0].mxu0
      %v1109 = vadd.f32 0.0, %v1108
      %v1110 = vpop.f32.mrb[0].mxu0
      %1111 = vmatprep.mubr.f32.mxu0 0.0
      %1112 = vmatmul.mubr.f32.gmra.mrb[0].mxu0 %v898
      %v1113 = vpop.f32.mrb[0].mxu0
      %v1114 = vadd.f32 0.0, %v1113
      %v1115 = vpop.f32.mrb[0].mxu0
      %1116 = vmatprep.mubr.f32.mxu0 0.0
      %1117 = vmatmul.mubr.f32.gmra.mrb[0].mxu0 %v901
      %v1118 = vpop.f32.mrb[0].mxu0
      %v1119 = vadd.f32 0.0, %v1118
      %v1120 = vpop.f32.mrb[0].mxu0
      %1121 = vmatprep.mubr.f32.mxu0 0.0
      %1122 = vmatmul.mubr.f32.gmra.mrb[0].mxu0 %v904
      %v1123 = vpop.f32.mrb[0].mxu0
      %v1124 = vadd.f32 0.0, %v1123
      %v1125 = vpop.f32.mrb[0].mxu0
      %1126 = vmatprep.mubr.f32.mxu0 0.0
      %1127 = vmatmul.mubr.f32.gmra.mrb[0].mxu0 %v907
      %v1128 = vpop.f32.mrb[0].mxu0
      %v1129 = vadd.f32 0.0, %v1128
      %v1130 = vpop.f32.mrb[0].mxu0
      %1131 = vmatprep.mubr.f32.mxu0 0.0
      %1132 = vmatmul.mubr.f32.gmra.mrb[0].mxu0 %v910
      %v1133 = vpop.f32.mrb[0].mxu0
      %v1134 = vadd.f32 0.0, %v1133
      %v1135 = vpop.f32.mrb[0].mxu0
      %1136 = vdwg.mxu0
      %vm1137 = vcmask 523264
      %v1138 = vsel %vm1137, %v979, -inf
      %1139 = vmax.xlane.f32.xlu0 %v1138
      %v1140 = vpop.xlane.xlu0 %1139
      %v1141 = vsel %vm1137, %v984, -inf
      %1142 = vmax.xlane.f32.xlu0 %v1141
      %v1143 = vpop.xlane.xlu0 %1142
      %v1144 = vsel %vm1137, %v989, -inf
      %1145 = vmax.xlane.f32.xlu0 %v1144
      %v1146 = vpop.xlane.xlu0 %1145
      %v1147 = vsel %vm1137, %v994, -inf
      %1148 = vmax.xlane.f32.xlu0 %v1147
      %v1149 = vpop.xlane.xlu0 %1148
      %v1150 = vsel %vm1137, %v999, -inf
      %1151 = vmax.xlane.f32.xlu0 %v1150
      %v1152 = vpop.xlane.xlu0 %1151
      %v1153 = vsel %vm1137, %v1004, -inf
      %1154 = vmax.xlane.f32.xlu0 %v1153
      %v1155 = vpop.xlane.xlu0 %1154
      %v1156 = vsel %vm1137, %v1009, -inf
      %1157 = vmax.xlane.f32.xlu0 %v1156
      %v1158 = vpop.xlane.xlu0 %1157
      %v1159 = vsel %vm1137, %v1014, -inf
      %1160 = vmax.xlane.f32.xlu0 %v1159
      %v1161 = vpop.xlane.xlu0 %1160
      %v1162 = vsel %vm1137, %v1019, -inf
      %1163 = vmax.xlane.f32.xlu0 %v1162
      %v1164 = vpop.xlane.xlu0 %1163
      %v1165 = vsel %vm1137, %v1024, -inf
      %1166 = vmax.xlane.f32.xlu0 %v1165
      %v1167 = vpop.xlane.xlu0 %1166
      %v1168 = vsel %vm1137, %v1029, -inf
      %1169 = vmax.xlane.f32.xlu0 %v1168
      %v1170 = vpop.xlane.xlu0 %1169
      %v1171 = vsel %vm1137, %v1034, -inf
      %1172 = vmax.xlane.f32.xlu0 %v1171
      %v1173 = vpop.xlane.xlu0 %1172
      %v1174 = vsel %vm1137, %v1039, -inf
      %1175 = vmax.xlane.f32.xlu0 %v1174
      %v1176 = vpop.xlane.xlu0 %1175
      %v1177 = vsel %vm1137, %v1044, -inf
      %1178 = vmax.xlane.f32.xlu0 %v1177
      %v1179 = vpop.xlane.xlu0 %1178
      %v1180 = vsel %vm1137, %v1049, -inf
      %1181 = vmax.xlane.f32.xlu0 %v1180
      %v1182 = vpop.xlane.xlu0 %1181
      %v1183 = vsel %vm1137, %v1054, -inf
      %1184 = vmax.xlane.f32.xlu0 %v1183
      %v1185 = vpop.xlane.xlu0 %1184
      %v1186 = vsel %vm1137, %v1059, -inf
      %1187 = vmax.xlane.f32.xlu0 %v1186
      %v1188 = vpop.xlane.xlu0 %1187
      %v1189 = vsel %vm1137, %v1064, -inf
      %1190 = vmax.xlane.f32.xlu0 %v1189
      %v1191 = vpop.xlane.xlu0 %1190
      %v1192 = vsel %vm1137, %v1069, -inf
      %1193 = vmax.xlane.f32.xlu0 %v1192
      %v1194 = vpop.xlane.xlu0 %1193
      %v1195 = vsel %vm1137, %v1074, -inf
      %1196 = vmax.xlane.f32.xlu0 %v1195
      %v1197 = vpop.xlane.xlu0 %1196
      %v1198 = vsel %vm1137, %v1079, -inf
      %1199 = vmax.xlane.f32.xlu0 %v1198
      %v1200 = vpop.xlane.xlu0 %1199
      %v1201 = vsel %vm1137, %v1084, -inf
      %1202 = vmax.xlane.f32.xlu0 %v1201
      %v1203 = vpop.xlane.xlu0 %1202
      %v1204 = vsel %vm1137, %v1089, -inf
      %1205 = vmax.xlane.f32.xlu0 %v1204
      %v1206 = vpop.xlane.xlu0 %1205
      %v1207 = vsel %vm1137, %v1094, -inf
      %1208 = vmax.xlane.f32.xlu0 %v1207
      %v1209 = vpop.xlane.xlu0 %1208
      %v1210 = vsel %vm1137, %v1099, -inf
      %1211 = vmax.xlane.f32.xlu0 %v1210
      %v1212 = vpop.xlane.xlu0 %1211
      %v1213 = vsel %vm1137, %v1104, -inf
      %1214 = vmax.xlane.f32.xlu0 %v1213
      %v1215 = vpop.xlane.xlu0 %1214
      %v1216 = vsel %vm1137, %v1109, -inf
      %1217 = vmax.xlane.f32.xlu0 %v1216
      %v1218 = vpop.xlane.xlu0 %1217
      %v1219 = vsel %vm1137, %v1114, -inf
      %1220 = vmax.xlane.f32.xlu0 %v1219
      %v1221 = vpop.xlane.xlu0 %1220
      %v1222 = vsel %vm1137, %v1119, -inf
      %1223 = vmax.xlane.f32.xlu0 %v1222
      %v1224 = vpop.xlane.xlu0 %1223
      %v1225 = vsel %vm1137, %v1124, -inf
      %1226 = vmax.xlane.f32.xlu0 %v1225
      %v1227 = vpop.xlane.xlu0 %1226
      %v1228 = vsel %vm1137, %v1129, -inf
      %1229 = vmax.xlane.f32.xlu0 %v1228
      %v1230 = vpop.xlane.xlu0 %1229
      %v1231 = vsel %vm1137, %v1134, -inf
      %1232 = vmax.xlane.f32.xlu0 %v1231
      %v1233 = vpop.xlane.xlu0 %1232
      %v1234 = vsub.f32 %v979, %v1140
      %v1235 = vsub.f32 %v984, %v1143
      %v1236 = vsub.f32 %v989, %v1146
      %v1237 = vsub.f32 %v994, %v1149
      %v1238 = vsub.f32 %v999, %v1152
      %v1239 = vsub.f32 %v1004, %v1155
      %v1240 = vsub.f32 %v1009, %v1158
      %v1241 = vsub.f32 %v1014, %v1161
      %v1242 = vsub.f32 %v1019, %v1164
      %v1243 = vsub.f32 %v1024, %v1167
      %v1244 = vsub.f32 %v1029, %v1170
      %v1245 = vsub.f32 %v1034, %v1173
      %v1246 = vsub.f32 %v1039, %v1176
      %v1247 = vsub.f32 %v1044, %v1179
      %v1248 = vsub.f32 %v1049, %v1182
      %v1249 = vsub.f32 %v1054, %v1185
      %v1250 = vsub.f32 %v1059, %v1188
      %v1251 = vsub.f32 %v1064, %v1191
      %v1252 = vsub.f32 %v1069, %v1194
      %v1253 = vsub.f32 %v1074, %v1197
      %v1254 = vsub.f32 %v1079, %v1200
      %v1255 = vsub.f32 %v1084, %v1203
      %v1256 = vsub.f32 %v1089, %v1206
      %v1257 = vsub.f32 %v1094, %v1209
      %v1258 = vsub.f32 %v1099, %v1212
      %v1259 = vsub.f32 %v1104, %v1215
      %v1260 = vsub.f32 %v1109, %v1218
      %v1261 = vsub.f32 %v1114, %v1221
      %v1262 = vsub.f32 %v1119, %v1224
      %v1263 = vsub.f32 %v1124, %v1227
      %v1264 = vsub.f32 %v1129, %v1230
      %v1265 = vsub.f32 %v1134, %v1233
      %v1266 = vmul.f32 %v1234, 1.442695
      %v1267 = vpow.pop %v1266
      %v1268 = vmul.f32 %v1235, 1.442695
      %v1269 = vpow.pop %v1268
      %v1270 = vmul.f32 %v1236, 1.442695
      %v1271 = vpow.pop %v1270
      %v1272 = vmul.f32 %v1237, 1.442695
      %v1273 = vpow.pop %v1272
      %v1274 = vmul.f32 %v1238, 1.442695
      %v1275 = vpow.pop %v1274
      %v1276 = vmul.f32 %v1239, 1.442695
      %v1277 = vpow.pop %v1276
      %v1278 = vmul.f32 %v1240, 1.442695
      %v1279 = vpow.pop %v1278
      %v1280 = vmul.f32 %v1241, 1.442695
      %v1281 = vpow.pop %v1280
      %v1282 = vmul.f32 %v1242, 1.442695
      %v1283 = vpow.pop %v1282
      %v1284 = vmul.f32 %v1243, 1.442695
      %v1285 = vpow.pop %v1284
      %v1286 = vmul.f32 %v1244, 1.442695
      %v1287 = vpow.pop %v1286
      %v1288 = vmul.f32 %v1245, 1.442695
      %v1289 = vpow.pop %v1288
      %v1290 = vmul.f32 %v1246, 1.442695
      %v1291 = vpow.pop %v1290
      %v1292 = vmul.f32 %v1247, 1.442695
      %v1293 = vpow.pop %v1292
      %v1294 = vmul.f32 %v1248, 1.442695
      %v1295 = vpow.pop %v1294
      %v1296 = vmul.f32 %v1249, 1.442695
      %v1297 = vpow.pop %v1296
      %v1298 = vmul.f32 %v1250, 1.442695
      %v1299 = vpow.pop %v1298
      %v1300 = vmul.f32 %v1251, 1.442695
      %v1301 = vpow.pop %v1300
      %v1302 = vmul.f32 %v1252, 1.442695
      %v1303 = vpow.pop %v1302
      %v1304 = vmul.f32 %v1253, 1.442695
      %v1305 = vpow.pop %v1304
      %v1306 = vmul.f32 %v1254, 1.442695
      %v1307 = vpow.pop %v1306
      %v1308 = vmul.f32 %v1255, 1.442695
      %v1309 = vpow.pop %v1308
      %v1310 = vmul.f32 %v1256, 1.442695
      %v1311 = vpow.pop %v1310
      %v1312 = vmul.f32 %v1257, 1.442695
      %v1313 = vpow.pop %v1312
      %v1314 = vmul.f32 %v1258, 1.442695
      %v1315 = vpow.pop %v1314
      %v1316 = vmul.f32 %v1259, 1.442695
      %v1317 = vpow.pop %v1316
      %v1318 = vmul.f32 %v1260, 1.442695
      %v1319 = vpow.pop %v1318
      %v1320 = vmul.f32 %v1261, 1.442695
      %v1321 = vpow.pop %v1320
      %v1322 = vmul.f32 %v1262, 1.442695
      %v1323 = vpow.pop %v1322
      %v1324 = vmul.f32 %v1263, 1.442695
      %v1325 = vpow.pop %v1324
      %v1326 = vmul.f32 %v1264, 1.442695
      %v1327 = vpow.pop %v1326
      %v1328 = vmul.f32 %v1265, 1.442695
      %v1329 = vpow.pop %v1328
      %v1330 = vsel %vm1137, %v1267, 0.0
      %1331 = vadd.xlane.f32.xlu0 %v1330
      %v1332 = vpop.xlane.xlu0 %1331
      %v1333 = vsel %vm1137, %v1269, 0.0
      %1334 = vadd.xlane.f32.xlu0 %v1333
      %v1335 = vpop.xlane.xlu0 %1334
      %v1336 = vsel %vm1137, %v1271, 0.0
      %1337 = vadd.xlane.f32.xlu0 %v1336
      %v1338 = vpop.xlane.xlu0 %1337
      %v1339 = vsel %vm1137, %v1273, 0.0
      %1340 = vadd.xlane.f32.xlu0 %v1339
      %v1341 = vpop.xlane.xlu0 %1340
      %v1342 = vsel %vm1137, %v1275, 0.0
      %1343 = vadd.xlane.f32.xlu0 %v1342
      %v1344 = vpop.xlane.xlu0 %1343
      %v1345 = vsel %vm1137, %v1277, 0.0
      %1346 = vadd.xlane.f32.xlu0 %v1345
      %v1347 = vpop.xlane.xlu0 %1346
      %v1348 = vsel %vm1137, %v1279, 0.0
      %1349 = vadd.xlane.f32.xlu0 %v1348
      %v1350 = vpop.xlane.xlu0 %1349
      %v1351 = vsel %vm1137, %v1281, 0.0
      %1352 = vadd.xlane.f32.xlu0 %v1351
      %v1353 = vpop.xlane.xlu0 %1352
      %v1354 = vsel %vm1137, %v1283, 0.0
      %1355 = vadd.xlane.f32.xlu0 %v1354
      %v1356 = vpop.xlane.xlu0 %1355
      %v1357 = vsel %vm1137, %v1285, 0.0
      %1358 = vadd.xlane.f32.xlu0 %v1357
      %v1359 = vpop.xlane.xlu0 %1358
      %v1360 = vsel %vm1137, %v1287, 0.0
      %1361 = vadd.xlane.f32.xlu0 %v1360
      %v1362 = vpop.xlane.xlu0 %1361
      %v1363 = vsel %vm1137, %v1289, 0.0
      %1364 = vadd.xlane.f32.xlu0 %v1363
      %v1365 = vpop.xlane.xlu0 %1364
      %v1366 = vsel %vm1137, %v1291, 0.0
      %1367 = vadd.xlane.f32.xlu0 %v1366
      %v1368 = vpop.xlane.xlu0 %1367
      %v1369 = vsel %vm1137, %v1293, 0.0
      %1370 = vadd.xlane.f32.xlu0 %v1369
      %v1371 = vpop.xlane.xlu0 %1370
      %v1372 = vsel %vm1137, %v1295, 0.0
      %1373 = vadd.xlane.f32.xlu0 %v1372
      %v1374 = vpop.xlane.xlu0 %1373
      %v1375 = vsel %vm1137, %v1297, 0.0
      %1376 = vadd.xlane.f32.xlu0 %v1375
      %v1377 = vpop.xlane.xlu0 %1376
      %v1378 = vsel %vm1137, %v1299, 0.0
      %1379 = vadd.xlane.f32.xlu0 %v1378
      %v1380 = vpop.xlane.xlu0 %1379
      %v1381 = vsel %vm1137, %v1301, 0.0
      %1382 = vadd.xlane.f32.xlu0 %v1381
      %v1383 = vpop.xlane.xlu0 %1382
      %v1384 = vsel %vm1137, %v1303, 0.0
      %1385 = vadd.xlane.f32.xlu0 %v1384
      %v1386 = vpop.xlane.xlu0 %1385
      %v1387 = vsel %vm1137, %v1305, 0.0
      %1388 = vadd.xlane.f32.xlu0 %v1387
      %v1389 = vpop.xlane.xlu0 %1388
      %v1390 = vsel %vm1137, %v1307, 0.0
      %1391 = vadd.xlane.f32.xlu0 %v1390
      %v1392 = vpop.xlane.xlu0 %1391
      %v1393 = vsel %vm1137, %v1309, 0.0
      %1394 = vadd.xlane.f32.xlu0 %v1393
      %v1395 = vpop.xlane.xlu0 %1394
      %v1396 = vsel %vm1137, %v1311, 0.0
      %1397 = vadd.xlane.f32.xlu0 %v1396
      %v1398 = vpop.xlane.xlu0 %1397
      %v1399 = vsel %vm1137, %v1313, 0.0
      %1400 = vadd.xlane.f32.xlu0 %v1399
      %v1401 = vpop.xlane.xlu0 %1400
      %v1402 = vsel %vm1137, %v1315, 0.0
      %1403 = vadd.xlane.f32.xlu0 %v1402
      %v1404 = vpop.xlane.xlu0 %1403
      %v1405 = vsel %vm1137, %v1317, 0.0
      %1406 = vadd.xlane.f32.xlu0 %v1405
      %v1407 = vpop.xlane.xlu0 %1406
      %v1408 = vsel %vm1137, %v1319, 0.0
      %1409 = vadd.xlane.f32.xlu0 %v1408
      %v1410 = vpop.xlane.xlu0 %1409
      %v1411 = vsel %vm1137, %v1321, 0.0
      %1412 = vadd.xlane.f32.xlu0 %v1411
      %v1413 = vpop.xlane.xlu0 %1412
      %v1414 = vsel %vm1137, %v1323, 0.0
      %1415 = vadd.xlane.f32.xlu0 %v1414
      %v1416 = vpop.xlane.xlu0 %1415
      %v1417 = vsel %vm1137, %v1325, 0.0
      %1418 = vadd.xlane.f32.xlu0 %v1417
      %v1419 = vpop.xlane.xlu0 %1418
      %v1420 = vsel %vm1137, %v1327, 0.0
      %1421 = vadd.xlane.f32.xlu0 %v1420
      %v1422 = vpop.xlane.xlu0 %1421
      %v1423 = vsel %vm1137, %v1329, 0.0
      %1424 = vadd.xlane.f32.xlu0 %v1423
      %v1425 = vpop.xlane.xlu0 %1424
      %v1426 = vrcp.pop %v1332
      %v1427 = vrcp.pop %v1335
      %v1428 = vrcp.pop %v1338
      %v1429 = vrcp.pop %v1341
      %v1430 = vrcp.pop %v1344
      %v1431 = vrcp.pop %v1347
      %v1432 = vrcp.pop %v1350
      %v1433 = vrcp.pop %v1353
      %v1434 = vrcp.pop %v1356
      %v1435 = vrcp.pop %v1359
      %v1436 = vrcp.pop %v1362
      %v1437 = vrcp.pop %v1365
      %v1438 = vrcp.pop %v1368
      %v1439 = vrcp.pop %v1371
      %v1440 = vrcp.pop %v1374
      %v1441 = vrcp.pop %v1377
      %v1442 = vrcp.pop %v1380
      %v1443 = vrcp.pop %v1383
      %v1444 = vrcp.pop %v1386
      %v1445 = vrcp.pop %v1389
      %v1446 = vrcp.pop %v1392
      %v1447 = vrcp.pop %v1395
      %v1448 = vrcp.pop %v1398
      %v1449 = vrcp.pop %v1401
      %v1450 = vrcp.pop %v1404
      %v1451 = vrcp.pop %v1407
      %v1452 = vrcp.pop %v1410
      %v1453 = vrcp.pop %v1413
      %v1454 = vrcp.pop %v1416
      %v1455 = vrcp.pop %v1419
      %v1456 = vrcp.pop %v1422
      %v1457 = vrcp.pop %v1425
      %v1458 = vmul.f32 %v1267, %v1426
      %v1459 = vmul.f32 %v1269, %v1427
      %v1460 = vmul.f32 %v1271, %v1428
      %v1461 = vmul.f32 %v1273, %v1429
      %v1462 = vmul.f32 %v1275, %v1430
      %v1463 = vmul.f32 %v1277, %v1431
      %v1464 = vmul.f32 %v1279, %v1432
      %v1465 = vmul.f32 %v1281, %v1433
      %v1466 = vmul.f32 %v1283, %v1434
      %v1467 = vmul.f32 %v1285, %v1435
      %v1468 = vmul.f32 %v1287, %v1436
      %v1469 = vmul.f32 %v1289, %v1437
      %v1470 = vmul.f32 %v1291, %v1438
      %v1471 = vmul.f32 %v1293, %v1439
      %v1472 = vmul.f32 %v1295, %v1440
      %v1473 = vmul.f32 %v1297, %v1441
      %v1474 = vmul.f32 %v1299, %v1442
      %v1475 = vmul.f32 %v1301, %v1443
      %v1476 = vmul.f32 %v1303, %v1444
      %v1477 = vmul.f32 %v1305, %v1445
      %v1478 = vmul.f32 %v1307, %v1446
      %v1479 = vmul.f32 %v1309, %v1447
      %v1480 = vmul.f32 %v1311, %v1448
      %v1481 = vmul.f32 %v1313, %v1449
      %v1482 = vmul.f32 %v1315, %v1450
      %v1483 = vmul.f32 %v1317, %v1451
      %v1484 = vmul.f32 %v1319, %v1452
      %v1485 = vmul.f32 %v1321, %v1453
      %v1486 = vmul.f32 %v1323, %v1454
      %v1487 = vmul.f32 %v1325, %v1455
      %v1488 = vmul.f32 %v1327, %v1456
      %v1489 = vmul.f32 %v1329, %v1457
      %v1491 = vsel %vm1137, %v750, 0
      %v1494 = vsel %vm1137, %v1458, 0
      %v1497 = vsel %vm1137, %v1459, 0
      %v1500 = vsel %vm1137, %v1460, 0
      %v1503 = vsel %vm1137, %v1461, 0
      %v1506 = vsel %vm1137, %v1462, 0
      %v1509 = vsel %vm1137, %v1463, 0
      %v1512 = vsel %vm1137, %v1464, 0
      %v1515 = vsel %vm1137, %v1465, 0
      %v1518 = vsel %vm1137, %v1466, 0
      %v1521 = vsel %vm1137, %v1467, 0
      %v1524 = vsel %vm1137, %v1468, 0
      %v1527 = vsel %vm1137, %v1469, 0
      %v1530 = vsel %vm1137, %v1470, 0
      %v1533 = vsel %vm1137, %v1471, 0
      %v1536 = vsel %vm1137, %v1472, 0
      %v1539 = vsel %vm1137, %v1473, 0
      %v1542 = vsel %vm1137, %v1474, 0
      %v1545 = vsel %vm1137, %v1475, 0
      %v1548 = vsel %vm1137, %v1476, 0
      %v1551 = vsel %vm1137, %v1477, 0
      %v1554 = vsel %vm1137, %v1478, 0
      %v1557 = vsel %vm1137, %v1479, 0
      %v1560 = vsel %vm1137, %v1480, 0
      %v1563 = vsel %vm1137, %v1481, 0
      %v1566 = vsel %vm1137, %v1482, 0
      %v1569 = vsel %vm1137, %v1483, 0
      %v1572 = vsel %vm1137, %v1484, 0
      %v1575 = vsel %vm1137, %v1485, 0
      %v1578 = vsel %vm1137, %v1486, 0
      %v1581 = vsel %vm1137, %v1487, 0
      %v1584 = vsel %vm1137, %v1488, 0
      %v1587 = vsel %vm1137, %v1489, 0
      %1589 = vmatprep.subr.mxu0 0.0
      %1590 = vmatpush1.xpose.msra.mxu0 %v1494
      %1591 = vmatprep.subr.mxu0 0.0
      %1592 = vmatpush1.xpose.msra.mxu0 %v1497
      %1593 = vmatprep.subr.mxu0 0.0
      %1594 = vmatpush1.xpose.msra.mxu0 %v1500
      %1595 = vmatprep.subr.mxu0 0.0
      %1596 = vmatpush1.xpose.msra.mxu0 %v1503
      %1597 = vmatprep.subr.mxu0 0.0
      %1598 = vmatpush1.xpose.msra.mxu0 %v1506
      %1599 = vmatprep.subr.mxu0 0.0
      %1600 = vmatpush1.xpose.msra.mxu0 %v1509
      %1601 = vmatprep.subr.mxu0 0.0
      %1602 = vmatpush1.xpose.msra.mxu0 %v1512
      %1603 = vmatprep.subr.mxu0 0.0
      %1604 = vmatpush1.xpose.msra.mxu0 %v1515
      %1605 = vmatprep.subr.mxu0 0.0
      %1606 = vmatpush1.xpose.msra.mxu0 %v1518
      %1607 = vmatprep.subr.mxu0 0.0
      %1608 = vmatpush1.xpose.msra.mxu0 %v1521
      %1609 = vmatprep.subr.mxu0 0.0
      %1610 = vmatpush1.xpose.msra.mxu0 %v1524
      %1611 = vmatprep.subr.mxu0 0.0
      %1612 = vmatpush1.xpose.msra.mxu0 %v1527
      %1613 = vmatprep.subr.mxu0 0.0
      %1614 = vmatpush1.xpose.msra.mxu0 %v1530
      %1615 = vmatprep.subr.mxu0 0.0
      %1616 = vmatpush1.xpose.msra.mxu0 %v1533
      %1617 = vmatprep.subr.mxu0 0.0
      %1618 = vmatpush1.xpose.msra.mxu0 %v1536
      %1619 = vmatprep.subr.mxu0 0.0
      %1620 = vmatpush1.xpose.msra.mxu0 %v1539
      %1621 = vmatprep.subr.mxu0 0.0
      %1622 = vmatpush1.xpose.msra.mxu0 %v1542
      %1623 = vmatprep.subr.mxu0 0.0
      %1624 = vmatpush1.xpose.msra.mxu0 %v1545
      %1625 = vmatprep.subr.mxu0 0.0
      %1626 = vmatpush1.xpose.msra.mxu0 %v1548
      %1627 = vmatprep.subr.mxu0 0.0
      %1628 = vmatpush1.xpose.msra.mxu0 %v1551
      %1629 = vmatprep.subr.mxu0 0.0
      %1630 = vmatpush1.xpose.msra.mxu0 %v1554
      %1631 = vmatprep.subr.mxu0 0.0
      %1632 = vmatpush1.xpose.msra.mxu0 %v1557
      %1633 = vmatprep.subr.mxu0 0.0
      %1634 = vmatpush1.xpose.msra.mxu0 %v1560
      %1635 = vmatprep.subr.mxu0 0.0
      %1636 = vmatpush1.xpose.msra.mxu0 %v1563
      %1637 = vmatprep.subr.mxu0 0.0
      %1638 = vmatpush1.xpose.msra.mxu0 %v1566
      %1639 = vmatprep.subr.mxu0 0.0
      %1640 = vmatpush1.xpose.msra.mxu0 %v1569
      %1641 = vmatprep.subr.mxu0 0.0
      %1642 = vmatpush1.xpose.msra.mxu0 %v1572
      %1643 = vmatprep.subr.mxu0 0.0
      %1644 = vmatpush1.xpose.msra.mxu0 %v1575
      %1645 = vmatprep.subr.mxu0 0.0
      %1646 = vmatpush1.xpose.msra.mxu0 %v1578
      %1647 = vmatprep.subr.mxu0 0.0
      %1648 = vmatpush1.xpose.msra.mxu0 %v1581
      %1649 = vmatprep.subr.mxu0 0.0
      %1650 = vmatpush1.xpose.msra.mxu0 %v1584
      %1651 = vmatprep.subr.mxu0 0.0
      %1652 = vmatpush1.xpose.msra.mxu0 %v1587
      %1653 = vmatprep.mubr.f32.mxu0 0.0
      %1654 = vmatmul.mubr.f32.gmra.mrb[0].mxu0 %v1491
      %v1655 = vpop.f32.mrb[0].mxu0
      %v1656 = vadd.f32 0.0, %v1655
      %v1657 = vpop.f32.mrb[0].mxu0
      %v1658 = vadd.f32 0.0, %v1657
      %1659 = vdwg.mxu0
      %v1660 = vld [vmem:[%s6] sm:$0xff]
      %v1661 = vld [vmem:[%s6 + $0x8] sm:$0xff]
      %v1662 = vld [vmem:[%s7] sm:$0xff]
      %v1663 = vld [vmem:[%s7 + $0x8] sm:$0xff]
      %1665 = vset.pattern.permute.xlu0 0
      %1666 = vperm.xlu0 %1665, %v1662
      %v1667 = vpop.permute.xlu0 %1666
      %1670 = vset.pattern.permute.xlu0 0
      %1671 = vperm.xlu0 %1670, %v1663
      %v1672 = vpop.permute.xlu0 %1671
      %v1675 = vsel %vm815, %v1660, 0
      %v1678 = vsel %vm815, %v1661, 0
      %1680 = vmatprep.subr.mxu0 %v1658
      %1681 = vmatpush1.msra.mxu0 %v1656
      %1682 = vmatprep.subr.mxu0 0.0
      %1683 = vmatpush1.msra.mxu0 0.0
      %1684 = vmatprep.subr.mxu0 0.0
      %1685 = vmatpush1.msra.mxu0 0.0
      %1686 = vmatprep.subr.mxu0 0.0
      %1687 = vmatpush1.msra.mxu0 0.0
      %1688 = vmatprep.subr.mxu0 0.0
      %1689 = vmatpush1.msra.mxu0 0.0
      %1690 = vmatprep.subr.mxu0 0.0
      %1691 = vmatpush1.msra.mxu0 0.0
      %1692 = vmatprep.subr.mxu0 0.0
      %1693 = vmatpush1.msra.mxu0 0.0
      %1694 = vmatprep.subr.mxu0 0.0
      %1695 = vmatpush1.msra.mxu0 0.0
      %1696 = vmatprep.subr.mxu0 0.0
      %1697 = vmatpush1.msra.mxu0 0.0
      %1698 = vmatprep.subr.mxu0 0.0
      %1699 = vmatpush1.msra.mxu0 0.0
      %1700 = vmatprep.subr.mxu0 0.0
      %1701 = vmatpush1.msra.mxu0 0.0
      %1702 = vmatprep.subr.mxu0 0.0
      %1703 = vmatpush1.msra.mxu0 0.0
      %1704 = vmatprep.subr.mxu0 0.0
      %1705 = vmatpush1.msra.mxu0 0.0
      %1706 = vmatprep.subr.mxu0 0.0
      %1707 = vmatpush1.msra.mxu0 0.0
      %1708 = vmatprep.subr.mxu0 0.0
      %1709 = vmatpush1.msra.mxu0 0.0
      %1710 = vmatprep.subr.mxu0 0.0
      %1711 = vmatpush1.msra.mxu0 0.0
      %1712 = vmatprep.subr.mxu0 0.0
      %1713 = vmatpush1.msra.mxu0 0.0
      %1714 = vmatprep.subr.mxu0 0.0
      %1715 = vmatpush1.msra.mxu0 0.0
      %1716 = vmatprep.subr.mxu0 0.0
      %1717 = vmatpush1.msra.mxu0 0.0
      %1718 = vmatprep.subr.mxu0 0.0
      %1719 = vmatpush1.msra.mxu0 0.0
      %1720 = vmatprep.subr.mxu0 0.0
      %1721 = vmatpush1.msra.mxu0 0.0
      %1722 = vmatprep.subr.mxu0 0.0
      %1723 = vmatpush1.msra.mxu0 0.0
      %1724 = vmatprep.subr.mxu0 0.0
      %1725 = vmatpush1.msra.mxu0 0.0
      %1726 = vmatprep.subr.mxu0 0.0
      %1727 = vmatpush1.msra.mxu0 0.0
      %1728 = vmatprep.subr.mxu0 0.0
      %1729 = vmatpush1.msra.mxu0 0.0
      %1730 = vmatprep.subr.mxu0 0.0
      %1731 = vmatpush1.msra.mxu0 0.0
      %1732 = vmatprep.subr.mxu0 0.0
      %1733 = vmatpush1.msra.mxu0 0.0
      %1734 = vmatprep.subr.mxu0 0.0
      %1735 = vmatpush1.msra.mxu0 0.0
      %1736 = vmatprep.subr.mxu0 0.0
      %1737 = vmatpush1.msra.mxu0 0.0
      %1738 = vmatprep.subr.mxu0 0.0
      %1739 = vmatpush1.msra.mxu0 0.0
      %1740 = vmatprep.subr.mxu0 0.0
      %1741 = vmatpush1.msra.mxu0 0.0
      %1742 = vmatprep.subr.mxu0 0.0
      %1743 = vmatpush1.msra.mxu0 0.0
      %1744 = vmatprep.mubr.f32.mxu0 0.0
      %1745 = vmatmul.mubr.f32.gmra.mrb[0].mxu0 %v1675
      %v1746 = vpop.f32.mrb[0].mxu0
      %v1747 = vadd.f32 %v1667, %v1746
      %v1748 = vpop.f32.mrb[0].mxu0
      %v1749 = vadd.f32 %v1667, %v1748
      %1750 = vmatprep.mubr.f32.mxu0 0.0
      %1751 = vmatmul.mubr.f32.gmra.mrb[0].mxu0 %v1678
      %v1752 = vpop.f32.mrb[0].mxu0
      %v1753 = vadd.f32 %v1672, %v1752
      %v1754 = vpop.f32.mrb[0].mxu0
      %v1755 = vadd.f32 %v1672, %v1754
      %1756 = vdwg.mxu0
      %v1757 = vadd.f32 %v1747, %v326
      %v1758 = vadd.f32 %v1749, %v327
      %v1759 = vadd.f32 %v1753, %v328
      %v1760 = vadd.f32 %v1755, %v329
      %1761 = vst [vmem:[%s325] sm:$0xff] %v1757
      %1762 = vst [vmem:[%s325 + $0x8] sm:$0xff] %v1758
      %1763 = vst [vmem:[%s325 + $0x10] sm:$0xff] %v1759
      %1764 = vst [vmem:[%s325 + $0x18] sm:$0xff] %v1760
      %p1765 = scmp.lt.s32.totalorder %s19, 1
      %s1766 = scalar_select %p1765, %s19, 1
      %s1767 = smul.addr %s1766, 4
      %s1768 = smul.addr %s1767, 8
      %s1769 = scalar_lea.vmem %s8, %s1768
      // Predicated region
      $region53: #{joint_layer_forward.1} parent=51 // pred_check
        %p1770 = pneg %p215
      $region54: #{joint_layer_forward.1} parent=51 // pred_check_branch
        %1772 = sbr.rel (%p1770) target = $region56
      $region55: #{joint_layer_forward.1} parent=51 // pred_region
        _
      $region56: #{joint_layer_forward.1} parent=51 // pred_fallthru
        _
    $region52: #{joint_layer_forward.1} parent=5 // pred_fallthru
      _
    %p1773 = scmp.le.s32.totalorder 2, %s14
    // Predicated region
    $region57: #{joint_layer_forward.1} parent=5 // pred_check
      %p1774 = pneg %p1773
    $region58: #{joint_layer_forward.1} parent=5 // pred_check_branch
      %1776 = sbr.rel (%p1774) target = $region60
    $region59: #{joint_layer_forward.1} parent=5 // pred_region
      %s1777 = ssub.s32 %s14, 2
      // Predicated region
      $region61: #{joint_layer_forward.1} parent=59 // pred_check
        %p1778 = pneg %p221
      $region62: #{joint_layer_forward.1} parent=59 // pred_check_branch
        %1780 = sbr.rel (%p1778) target = $region64
      $region63: #{joint_layer_forward.1} parent=59 // pred_region
        %p1781 = scmp.lt.s32.totalorder %s20, 1
        %s1782 = scalar_select %p1781, %s20, 1
        %s1783 = smul.addr %s1782, 4
        %s1784 = smul.addr %s1783, 8
        %s1785 = scalar_lea.vmem %s8, %s1784
      $region64: #{joint_layer_forward.1} parent=59 // pred_fallthru
        _
    $region60: #{joint_layer_forward.1} parent=5 // pred_fallthru
      _
  $region6: #{joint_layer_forward.1} parent=0 // loop_footer
    %s18 = sadd.s32 1, %s14
  $region7: #{joint_layer_forward.1} parent=0 // loop_footer_branch
    %13 = sbr.rel target = $region3
  $region8: #{joint_layer_forward.1} parent=0 // loop_exit
    _

</llo_original>
